<compile_context>
chip_gen: v7x
topology: tpu7x:2x2x1
jax: 0.10.0
libtpu: 0.0.40
codegen_flags: <defaults>
</compile_context>

<pallas_src>
import functools

import jax
import jax.numpy as jnp
import numpy as np
from jax import lax
from jax.experimental import pallas as pl
from jax.experimental.pallas import tpu as pltpu


def _round_up(x, m):
    return (x + m - 1) // m * m


# -----------------------------------------------------------------------------
# Pallas kernel: one RelationalGraphAttentionLayer forward, tiled over edges
# -----------------------------------------------------------------------------
def rgat_layer_kernel(h_ref, src_oh_ref, dst_oh_ref, r_ref,
                      wm_ref, ablk_ref, wr_ref, bm1_ref, wm2_ref, bm2_ref,
                      wout_ref, bout_ref,
                      out_ref,
                      pack_s, sdst_s, num_s, den_s,
                      *, num_heads, out_dim):
    f32 = jnp.float32
    bf16 = jnp.bfloat16
    M = num_heads
    tile = pl.program_id(0)
    last = pl.num_programs(0) - 1

    # ---- tile 0: zero accumulators, compute node-side projections once ----
    @pl.when(tile == 0)
    def _init():
        num_s[...] = jnp.zeros_like(num_s)
        den_s[...] = jnp.zeros_like(den_s)
        # all heads fused: [N, M*out]
        wh_all = jnp.dot(h_ref[...], wm_ref[...], preferred_element_type=f32)
        # per-node attention scores for all heads (src part cols 0..M-1,
        # dst part cols M..2M-1) via block-diagonal attention matrix
        s_nodes = jnp.dot(wh_all, ablk_ref[...], preferred_element_type=f32)
        pack_s[...] = jnp.concatenate([wh_all, s_nodes[:, :M]],
                                      axis=-1).astype(bf16)
        sdst_s[...] = s_nodes[:, M:].astype(bf16)

    src_oh = src_oh_ref[...]          # [TE, N] bf16 (0/1 exact)
    dst_oh = dst_oh_ref[...]          # [TE, N] bf16

    # ---- gathers: one wide src gather, one narrow dst gather ----
    gathered = jnp.dot(src_oh, pack_s[...], preferred_element_type=f32)   # [TE, M*out+M]
    wh_src = gathered[:, :M * out_dim]                                    # [TE, M*out]
    s_src = gathered[:, M * out_dim:]                                     # [TE, M]
    s_dst = jnp.dot(dst_oh, sdst_s[...], preferred_element_type=f32)      # [TE, M]

    # ---- attention scores (all heads at once) ----
    score = s_src + s_dst
    score = jnp.where(score > 0, score, 0.2 * score)     # LeakyReLU(0.2)
    alpha = jnp.exp(score)                                # [TE, M]

    # ---- relation branch (shared across heads) ----
    rel_hidden = jnp.maximum(
        jnp.dot(r_ref[...], wr_ref[...], preferred_element_type=f32) + bm1_ref[...],
        0.0)
    rel_alpha = jnp.exp(
        jnp.dot(rel_hidden, wm2_ref[...], preferred_element_type=f32) + bm2_ref[...])  # [TE,1]

    # ---- un-normalised messages, layout [att_h0..att_hM-1 | rel_h0..rel_hM-1] ----
    msgs = jnp.concatenate(
        [wh_src[:, m * out_dim:(m + 1) * out_dim] * alpha[:, m:m + 1]
         for m in range(M)] +
        [wh_src[:, m * out_dim:(m + 1) * out_dim] * rel_alpha
         for m in range(M)],
        axis=-1)                                          # [TE, 2*M*out]
    alphas_all = jnp.concatenate([alpha, rel_alpha], axis=-1)   # [TE, M+1]

    # ---- scatter-add onto destination nodes: contract the edge dim directly
    #      (no materialised dst_oh.T) ----
    dn = (((0,), (0,)), ((), ()))
    num_s[...] += lax.dot_general(dst_oh, msgs.astype(bf16), dn,
                                  preferred_element_type=f32)
    den_s[...] += lax.dot_general(dst_oh, alphas_all.astype(bf16), dn,
                                  preferred_element_type=f32)

    # ---- finalize: normalise per destination node, project, relu ----
    @pl.when(tile == last)
    def _finalize():
        inv = pl.reciprocal(den_s[...] + 1e-9, approx=True)        # [N, M+1]
        num = num_s[...]
        parts = ([num[:, m * out_dim:(m + 1) * out_dim] * inv[:, m:m + 1]
                  for m in range(M)] +
                 [num[:, (M + m) * out_dim:(M + m + 1) * out_dim] * inv[:, M:M + 1]
                  for m in range(M)])
        x = jnp.concatenate(parts, axis=-1)                         # [N, 2*M*out]
        y = jnp.dot(x, wout_ref[...], preferred_element_type=f32) + bout_ref[...]
        out_ref[...] = jnp.maximum(y, 0.0)


# -----------------------------------------------------------------------------
# Wrapper: one layer (inputs already padded: N_pad nodes, E_pad edges)
# -----------------------------------------------------------------------------
def rgat_layer(h, src_oh, dst_oh, r_ij, params, *, edge_tile):
    N_pad, in_dim = h.shape
    E_pad = src_oh.shape[0]
    r_dim = r_ij.shape[1]
    M, _, out_dim = params["wm"].shape
    num_tiles = E_pad // edge_tile

    # fuse the per-head weights: [in_dim, M*out]
    wm_flat = jnp.transpose(params["wm"], (1, 0, 2)).reshape(in_dim, M * out_dim)

    # block-diagonal attention matrix: col m = a_src for head m, col M+m = a_dst
    a_blk = jnp.zeros((M * out_dim, 2 * M), jnp.float32)
    for m in range(M):
        a_blk = a_blk.at[m * out_dim:(m + 1) * out_dim, m].set(params["a_src"][:, 0])
        a_blk = a_blk.at[m * out_dim:(m + 1) * out_dim, M + m].set(params["a_dst"][:, 0])

    kernel = functools.partial(rgat_layer_kernel, num_heads=M, out_dim=out_dim)

    full = lambda shape: pl.BlockSpec(shape, lambda e: (0, 0))
    grid_spec = pltpu.PrefetchScalarGridSpec(
        num_scalar_prefetch=0,
        grid=(num_tiles,),
        in_specs=[
            full((N_pad, in_dim)),                                   # h
            pl.BlockSpec((edge_tile, N_pad), lambda e: (e, 0)),      # src_oh (bf16)
            pl.BlockSpec((edge_tile, N_pad), lambda e: (e, 0)),      # dst_oh (bf16)
            pl.BlockSpec((edge_tile, r_dim), lambda e: (e, 0)),      # r_ij
            full((in_dim, M * out_dim)),                             # wm_flat
            full((M * out_dim, 2 * M)),                              # a_blk
            full((r_dim, out_dim)),                                  # wr
            full((1, out_dim)),                                      # bm1
            full((out_dim, 1)),                                      # wm2
            full((1, 1)),                                            # bm2
            full((2 * M * out_dim, out_dim)),                        # wout
            full((1, out_dim)),                                      # bout
        ],
        out_specs=pl.BlockSpec((N_pad, out_dim), lambda e: (0, 0)),
        scratch_shapes=[
            pltpu.VMEM((N_pad, M * out_dim + M), jnp.bfloat16),      # [Wh_all | s_src]
            pltpu.VMEM((N_pad, M), jnp.bfloat16),                    # s_dst per node
            pltpu.VMEM((N_pad, 2 * M * out_dim), jnp.float32),       # numerator acc
            pltpu.VMEM((N_pad, M + 1), jnp.float32),                 # denominator acc
        ],
    )
    return pl.pallas_call(
        kernel,
        out_shape=jax.ShapeDtypeStruct((N_pad, out_dim), jnp.float32),
        grid_spec=grid_spec,
        compiler_params=pltpu.CompilerParams(
            dimension_semantics=("arbitrary",),           # edge axis carries accumulators
            vmem_limit_bytes=48 * 1024 * 1024),
    )(h, src_oh, dst_oh, r_ij,
      wm_flat, a_blk, params["wr"], params["bm1"], params["wm2"], params["bm2"],
      params["wout"], params["bout"])


def rgat_model(node_feats, src, dst, rel_feats, params1, params2, *, edge_tile=256):
    N, in_dim = node_feats.shape
    E = src.shape[0]
    N_pad = _round_up(N, 8)
    TE = _round_up(min(edge_tile, _round_up(E, 8)), 8)
    E_pad = _round_up(E, TE)

    # padded bf16 one-hots (0/1 exact in bf16); padded edge rows are all-zero
    # so they contribute nothing to any gather/scatter.
    src_oh = jnp.pad(jax.nn.one_hot(src, N_pad, dtype=jnp.bfloat16),
                     ((0, E_pad - E), (0, 0)))
    dst_oh = jnp.pad(jax.nn.one_hot(dst, N_pad, dtype=jnp.bfloat16),
                     ((0, E_pad - E), (0, 0)))
    r_pad = jnp.pad(rel_feats, ((0, E_pad - E), (0, 0)))
    h_pad = jnp.pad(node_feats, ((0, N_pad - N), (0, 0)))

    x = rgat_layer(h_pad, src_oh, dst_oh, r_pad, params1, edge_tile=TE)
    x = rgat_layer(x, src_oh, dst_oh, r_pad, params2, edge_tile=TE)
    return x[:N]


# -----------------------------------------------------------------------------
# Deterministic parameter init (shapes from RelationalGraphAttentionLayer.__init__)
# -----------------------------------------------------------------------------
def init_layer_params(key, in_dim, out_dim, r_dim, num_heads):
    ks = jax.random.split(key, 6)

    def u(k, shape, fan_in):
        b = 1.0 / np.sqrt(fan_in)
        return jax.random.uniform(k, shape, jnp.float32, -b, b)

    attn = u(ks[3], (2 * out_dim,), 2 * out_dim)
    return {
        "wm":   u(ks[0], (num_heads, in_dim, out_dim), in_dim),      # W_m[m].weight.T
        "wr":   u(ks[1], (r_dim, out_dim), r_dim),                   # W_r.weight.T
        "bm1":  jnp.zeros((1, out_dim), jnp.float32),
        "wm2":  u(ks[2], (out_dim, 1), out_dim),                     # W_m2.weight.T
        "bm2":  jnp.zeros((1, 1), jnp.float32),
        "a_src": attn[:out_dim].reshape(out_dim, 1),                 # attn_fc split
        "a_dst": attn[out_dim:].reshape(out_dim, 1),
        "wout": u(ks[4], (2 * out_dim * num_heads, out_dim), 2 * out_dim * num_heads),
        "bout": u(ks[5], (1, out_dim), 2 * out_dim * num_heads),
    }


# -----------------------------------------------------------------------------
# Pure-JAX reference (mirrors the torch forward exactly, all f32)
# -----------------------------------------------------------------------------
def rgat_layer_ref(h, src, dst, r_ij, params):
    N = h.shape[0]
    M, _, out_dim = params["wm"].shape
    rel_hidden = jax.nn.relu(r_ij @ params["wr"] + params["bm1"])
    rel_score = (rel_hidden @ params["wm2"] + params["bm2"])[:, 0]
    rel_alpha = jnp.exp(rel_score)
    rel_denom = jnp.zeros(N, jnp.float32).at[dst].add(rel_alpha)
    beta = rel_alpha / (rel_denom[dst] + 1e-9)
    h_att, h_rel = [], []
    for m in range(M):
        Wh = h @ params["wm"][m]
        Wh_src, Wh_dst = Wh[src], Wh[dst]
        rel_agg = jnp.zeros((N, out_dim), jnp.float32).at[dst].add(Wh_src * beta[:, None])
        h_rel.append(rel_agg)
        score = Wh_src @ params["a_src"][:, 0] + Wh_dst @ params["a_dst"][:, 0]
        score = jnp.where(score > 0, score, 0.2 * score)
        alpha = jnp.exp(score)
        denom = jnp.zeros(N, jnp.float32).at[dst].add(alpha)
        alpha_ij = alpha / (denom[dst] + 1e-9)
        attn_agg = jnp.zeros((N, out_dim), jnp.float32).at[dst].add(Wh_src * alpha_ij[:, None])
        h_att.append(attn_agg)
    x = jnp.concatenate(h_att + h_rel, axis=-1)
    return jax.nn.relu(x @ params["wout"] + params["bout"])


if __name__ == "__main__":
    key = jax.random.PRNGKey(0)
    N, E = 12, 24
    in_dim, hidden_dim, out_dim, r_dim, num_heads = 16, 32, 16, 8, 2

    ks = jax.random.split(key, 6)
    node_feats = jax.random.normal(ks[0], (N, in_dim), jnp.float32)
    src = jax.random.randint(ks[1], (E,), 0, N)
    dst = jax.random.randint(ks[2], (E,), 0, N)
    rel_feats = jax.random.normal(ks[3], (E, r_dim), jnp.float32)

    params1 = init_layer_params(ks[4], in_dim, hidden_dim, r_dim, num_heads)
    params2 = init_layer_params(ks[5], hidden_dim, out_dim, r_dim, num_heads)

    # edge_tile=8 -> grid of 3 edge tiles, exercising the accumulate/finalize path
    out = rgat_model(node_feats, src, dst, rel_feats, params1, params2, edge_tile=8)
    out = jax.block_until_ready(out)

    # correctness check against the pure-f32 JAX reference of the torch forward
    # (kernel uses bf16 for the gather/scatter matmul operands, hence the tolerance)
    ref = rgat_layer_ref(node_feats, src, dst, rel_feats, params1)
    ref = rgat_layer_ref(ref, src, dst, rel_feats, params2)
    np.testing.assert_allclose(np.asarray(out), np.asarray(ref), rtol=3e-2, atol=3e-2)

    print("KERNEL_OK")
</pallas_src>

<mosaic_0001>
module attributes {stable_mosaic.version = 11 : i64} {
  func.func @rgat_layer_kernel(%arg0: i32, %arg1: memref<16x16xf32, #tpu.memory_space<vmem>>, %arg2: memref<8x16xbf16, #tpu.memory_space<vmem>>, %arg3: memref<8x16xbf16, #tpu.memory_space<vmem>>, %arg4: memref<8x8xf32, #tpu.memory_space<vmem>>, %arg5: memref<16x64xf32, #tpu.memory_space<vmem>>, %arg6: memref<64x4xf32, #tpu.memory_space<vmem>>, %arg7: memref<8x32xf32, #tpu.memory_space<vmem>>, %arg8: memref<1x32xf32, #tpu.memory_space<vmem>>, %arg9: memref<32x1xf32, #tpu.memory_space<vmem>>, %arg10: memref<1x1xf32, #tpu.memory_space<vmem>>, %arg11: memref<128x32xf32, #tpu.memory_space<vmem>>, %arg12: memref<1x32xf32, #tpu.memory_space<vmem>>, %arg13: memref<16x32xf32, #tpu.memory_space<vmem>>, %arg14: memref<16x66xbf16, #tpu.memory_space<vmem>>, %arg15: memref<16x2xbf16, #tpu.memory_space<vmem>>, %arg16: memref<16x128xf32, #tpu.memory_space<vmem>>, %arg17: memref<16x3xf32, #tpu.memory_space<vmem>>) attributes {dimension_semantics = [#tpu.dimension_semantics<arbitrary>], iteration_bounds = array<i64: 3>, scalar_prefetch = 0 : i64, scratch_operands = 4 : i64, tpu.core_type = #tpu.core_type<tc>, window_params = [{pipeline_mode = #tpu.pipeline_mode<synchronous>, transform_indices = @transform_0, window_bounds = array<i64: 16, 16>}, {transform_indices = @transform_1, window_bounds = array<i64: 8, 16>}, {transform_indices = @transform_2, window_bounds = array<i64: 8, 16>}, {transform_indices = @transform_3, window_bounds = array<i64: 8, 8>}, {pipeline_mode = #tpu.pipeline_mode<synchronous>, transform_indices = @transform_4, window_bounds = array<i64: 16, 64>}, {pipeline_mode = #tpu.pipeline_mode<synchronous>, transform_indices = @transform_5, window_bounds = array<i64: 64, 4>}, {pipeline_mode = #tpu.pipeline_mode<synchronous>, transform_indices = @transform_6, window_bounds = array<i64: 8, 32>}, {pipeline_mode = #tpu.pipeline_mode<synchronous>, transform_indices = @transform_7, window_bounds = array<i64: 1, 32>}, {pipeline_mode = #tpu.pipeline_mode<synchronous>, transform_indices = @transform_8, window_bounds = array<i64: 32, 1>}, {pipeline_mode = #tpu.pipeline_mode<synchronous>, transform_indices = @transform_9, window_bounds = array<i64: 1, 1>}, {pipeline_mode = #tpu.pipeline_mode<synchronous>, transform_indices = @transform_10, window_bounds = array<i64: 128, 32>}, {pipeline_mode = #tpu.pipeline_mode<synchronous>, transform_indices = @transform_11, window_bounds = array<i64: 1, 32>}, {pipeline_mode = #tpu.pipeline_mode<synchronous>, transform_indices = @transform_12, window_bounds = array<i64: 16, 32>}]} {
    %c0_i32 = arith.constant 0 : i32
    %0 = arith.cmpi eq, %arg0, %c0_i32 : i32
    %1 = arith.extui %0 : i1 to i32
    %c0_i32_0 = arith.constant 0 : i32
    %2 = arith.cmpi ne, %1, %c0_i32_0 : i32
    scf.if %2 {
      %cst_35 = arith.constant 0.000000e+00 : f32
      %61 = vector.broadcast %cst_35 : f32 to vector<16x128xf32>
      %c0_36 = arith.constant 0 : index
      %c0_37 = arith.constant 0 : index
      %62 = vector.load %arg16[%c0_36, %c0_37] : memref<16x128xf32, #tpu.memory_space<vmem>>, vector<16x128xf32>
      tpu.vector_store %arg16[%c0_36, %c0_37], %61 {strides = array<i32>} : memref<16x128xf32, #tpu.memory_space<vmem>>, vector<16x128xf32>,
      %cst_38 = arith.constant 0.000000e+00 : f32
      %63 = vector.broadcast %cst_38 : f32 to vector<16x3xf32>
      %c0_39 = arith.constant 0 : index
      %c0_40 = arith.constant 0 : index
      %64 = vector.load %arg17[%c0_39, %c0_40] : memref<16x3xf32, #tpu.memory_space<vmem>>, vector<16x3xf32>
      tpu.vector_store %arg17[%c0_39, %c0_40], %63 {strides = array<i32>} : memref<16x3xf32, #tpu.memory_space<vmem>>, vector<16x3xf32>,
      %c0_41 = arith.constant 0 : index
      %c0_42 = arith.constant 0 : index
      %65 = vector.load %arg1[%c0_41, %c0_42] : memref<16x16xf32, #tpu.memory_space<vmem>>, vector<16x16xf32>
      %c0_43 = arith.constant 0 : index
      %c0_44 = arith.constant 0 : index
      %66 = vector.load %arg5[%c0_43, %c0_44] : memref<16x64xf32, #tpu.memory_space<vmem>>, vector<16x64xf32>
      %cst_45 = arith.constant dense<0.000000e+00> : vector<16x64xf32>
      %67 = tpu.matmul %65, %66, %cst_45 {dimension_numbers = #tpu.dot_dimension_numbers<[1], [0], [0], [1], [0, 0, 1, 1], [], []>} : vector<16x16xf32>, vector<16x64xf32>, vector<16x64xf32> -> vector<16x64xf32>
      %c0_46 = arith.constant 0 : index
      %c0_47 = arith.constant 0 : index
      %68 = vector.load %arg6[%c0_46, %c0_47] : memref<64x4xf32, #tpu.memory_space<vmem>>, vector<64x4xf32>
      %cst_48 = arith.constant dense<0.000000e+00> : vector<16x4xf32>
      %69 = tpu.matmul %67, %68, %cst_48 {dimension_numbers = #tpu.dot_dimension_numbers<[1], [0], [0], [1], [0, 0, 1, 1], [], []>} : vector<16x64xf32>, vector<64x4xf32>, vector<16x4xf32> -> vector<16x4xf32>
      %70 = vector.extract_strided_slice %69 {offsets = [0, 0], sizes = [16, 2], strides = [1, 1]} : vector<16x4xf32> to vector<16x2xf32>
      %71 = tpu.concatenate %67, %70 in 1 : vector<16x64xf32>, vector<16x2xf32> -> vector<16x66xf32>
      %72 = arith.truncf %71 : vector<16x66xf32> to vector<16x66xbf16>
      %c0_49 = arith.constant 0 : index
      %c0_50 = arith.constant 0 : index
      %73 = vector.load %arg14[%c0_49, %c0_50] : memref<16x66xbf16, #tpu.memory_space<vmem>>, vector<16x66xbf16>
      tpu.vector_store %arg14[%c0_49, %c0_50], %72 {strides = array<i32>} : memref<16x66xbf16, #tpu.memory_space<vmem>>, vector<16x66xbf16>,
      %74 = vector.extract_strided_slice %69 {offsets = [0, 2], sizes = [16, 2], strides = [1, 1]} : vector<16x4xf32> to vector<16x2xf32>
      %75 = arith.truncf %74 : vector<16x2xf32> to vector<16x2xbf16>
      %c0_51 = arith.constant 0 : index
      %c0_52 = arith.constant 0 : index
      %76 = vector.load %arg15[%c0_51, %c0_52] : memref<16x2xbf16, #tpu.memory_space<vmem>>, vector<16x2xbf16>
      tpu.vector_store %arg15[%c0_51, %c0_52], %75 {strides = array<i32>} : memref<16x2xbf16, #tpu.memory_space<vmem>>, vector<16x2xbf16>,
    } else {
    }
    %c0 = arith.constant 0 : index
    %c0_1 = arith.constant 0 : index
    %3 = vector.load %arg2[%c0, %c0_1] : memref<8x16xbf16, #tpu.memory_space<vmem>>, vector<8x16xbf16>
    %c0_2 = arith.constant 0 : index
    %c0_3 = arith.constant 0 : index
    %4 = vector.load %arg3[%c0_2, %c0_3] : memref<8x16xbf16, #tpu.memory_space<vmem>>, vector<8x16xbf16>
    %c0_4 = arith.constant 0 : index
    %c0_5 = arith.constant 0 : index
    %5 = vector.load %arg14[%c0_4, %c0_5] : memref<16x66xbf16, #tpu.memory_space<vmem>>, vector<16x66xbf16>
    %cst = arith.constant dense<0.000000e+00> : vector<8x66xf32>
    %6 = tpu.matmul %3, %5, %cst {dimension_numbers = #tpu.dot_dimension_numbers<[1], [0], [0], [1], [0, 0, 1, 1], [], []>} : vector<8x16xbf16>, vector<16x66xbf16>, vector<8x66xf32> -> vector<8x66xf32>
    %7 = vector.extract_strided_slice %6 {offsets = [0, 0], sizes = [8, 64], strides = [1, 1]} : vector<8x66xf32> to vector<8x64xf32>
    %8 = vector.extract_strided_slice %6 {offsets = [0, 64], sizes = [8, 2], strides = [1, 1]} : vector<8x66xf32> to vector<8x2xf32>
    %c0_6 = arith.constant 0 : index
    %c0_7 = arith.constant 0 : index
    %9 = vector.load %arg15[%c0_6, %c0_7] : memref<16x2xbf16, #tpu.memory_space<vmem>>, vector<16x2xbf16>
    %cst_8 = arith.constant dense<0.000000e+00> : vector<8x2xf32>
    %10 = tpu.matmul %4, %9, %cst_8 {dimension_numbers = #tpu.dot_dimension_numbers<[1], [0], [0], [1], [0, 0, 1, 1], [], []>} : vector<8x16xbf16>, vector<16x2xbf16>, vector<8x2xf32> -> vector<8x2xf32>
    %11 = arith.addf %8, %10 : vector<8x2xf32>
    %cst_9 = arith.constant 0.000000e+00 : f32
    %12 = vector.broadcast %cst_9 : f32 to vector<8x2xf32>
    %13 = arith.cmpf ogt, %11, %12 : vector<8x2xf32>
    %cst_10 = arith.constant 2.000000e-01 : f32
    %14 = vector.broadcast %cst_10 : f32 to vector<8x2xf32>
    %15 = arith.mulf %14, %11 : vector<8x2xf32>
    %16 = arith.select %13, %11, %15 : vector<8x2xi1>, vector<8x2xf32>
    %17 = math.exp %16 : vector<8x2xf32>
    %c0_11 = arith.constant 0 : index
    %c0_12 = arith.constant 0 : index
    %18 = vector.load %arg4[%c0_11, %c0_12] : memref<8x8xf32, #tpu.memory_space<vmem>>, vector<8x8xf32>
    %c0_13 = arith.constant 0 : index
    %c0_14 = arith.constant 0 : index
    %19 = vector.load %arg7[%c0_13, %c0_14] : memref<8x32xf32, #tpu.memory_space<vmem>>, vector<8x32xf32>
    %cst_15 = arith.constant dense<0.000000e+00> : vector<8x32xf32>
    %20 = tpu.matmul %18, %19, %cst_15 {dimension_numbers = #tpu.dot_dimension_numbers<[1], [0], [0], [1], [0, 0, 1, 1], [], []>} : vector<8x8xf32>, vector<8x32xf32>, vector<8x32xf32> -> vector<8x32xf32>
    %c0_16 = arith.constant 0 : index
    %c0_17 = arith.constant 0 : index
    %21 = vector.load %arg8[%c0_16, %c0_17] : memref<1x32xf32, #tpu.memory_space<vmem>>, vector<1x32xf32>
    %22 = vector.broadcast %21 : vector<1x32xf32> to vector<8x32xf32>
    %23 = arith.addf %20, %22 : vector<8x32xf32>
    %cst_18 = arith.constant 0.000000e+00 : f32
    %24 = vector.broadcast %cst_18 : f32 to vector<8x32xf32>
    %25 = arith.maximumf %23, %24 : vector<8x32xf32>
    %c0_19 = arith.constant 0 : index
    %c0_20 = arith.constant 0 : index
    %26 = vector.load %arg9[%c0_19, %c0_20] : memref<32x1xf32, #tpu.memory_space<vmem>>, vector<32x1xf32>
    %cst_21 = arith.constant dense<0.000000e+00> : vector<8x1xf32>
    %27 = tpu.matmul %25, %26, %cst_21 {dimension_numbers = #tpu.dot_dimension_numbers<[1], [0], [0], [1], [0, 0, 1, 1], [], []>} : vector<8x32xf32>, vector<32x1xf32>, vector<8x1xf32> -> vector<8x1xf32>
    %c0_22 = arith.constant 0 : index
    %c0_23 = arith.constant 0 : index
    %28 = vector.load %arg10[%c0_22, %c0_23] : memref<1x1xf32, #tpu.memory_space<vmem>>, vector<1x1xf32>
    %29 = vector.broadcast %28 : vector<1x1xf32> to vector<8x1xf32>
    %30 = arith.addf %27, %29 : vector<8x1xf32>
    %31 = math.exp %30 : vector<8x1xf32>
    %32 = vector.extract_strided_slice %7 {offsets = [0, 0], sizes = [8, 32], strides = [1, 1]} : vector<8x64xf32> to vector<8x32xf32>
    %33 = vector.extract_strided_slice %17 {offsets = [0, 0], sizes = [8, 1], strides = [1, 1]} : vector<8x2xf32> to vector<8x1xf32>
    %34 = vector.broadcast %33 : vector<8x1xf32> to vector<8x32xf32>
    %35 = arith.mulf %32, %34 : vector<8x32xf32>
    %36 = vector.extract_strided_slice %7 {offsets = [0, 32], sizes = [8, 32], strides = [1, 1]} : vector<8x64xf32> to vector<8x32xf32>
    %37 = vector.extract_strided_slice %17 {offsets = [0, 1], sizes = [8, 1], strides = [1, 1]} : vector<8x2xf32> to vector<8x1xf32>
    %38 = vector.broadcast %37 : vector<8x1xf32> to vector<8x32xf32>
    %39 = arith.mulf %36, %38 : vector<8x32xf32>
    %40 = vector.extract_strided_slice %7 {offsets = [0, 0], sizes = [8, 32], strides = [1, 1]} : vector<8x64xf32> to vector<8x32xf32>
    %41 = vector.broadcast %31 : vector<8x1xf32> to vector<8x32xf32>
    %42 = arith.mulf %40, %41 : vector<8x32xf32>
    %43 = vector.extract_strided_slice %7 {offsets = [0, 32], sizes = [8, 32], strides = [1, 1]} : vector<8x64xf32> to vector<8x32xf32>
    %44 = vector.broadcast %31 : vector<8x1xf32> to vector<8x32xf32>
    %45 = arith.mulf %43, %44 : vector<8x32xf32>
    %46 = tpu.concatenate %35, %39, %42, %45 in 1 : vector<8x32xf32>, vector<8x32xf32>, vector<8x32xf32>, vector<8x32xf32> -> vector<8x128xf32>
    %47 = tpu.concatenate %17, %31 in 1 : vector<8x2xf32>, vector<8x1xf32> -> vector<8x3xf32>
    %c0_24 = arith.constant 0 : index
    %c0_25 = arith.constant 0 : index
    %48 = vector.load %arg16[%c0_24, %c0_25] : memref<16x128xf32, #tpu.memory_space<vmem>>, vector<16x128xf32>
    %49 = arith.truncf %46 : vector<8x128xf32> to vector<8x128xbf16>
    %cst_26 = arith.constant dense<0.000000e+00> : vector<16x128xf32>
    %50 = tpu.matmul %4, %49, %cst_26 {dimension_numbers = #tpu.dot_dimension_numbers<[0], [0], [1], [1], [0, 1, 1, 1], [], []>} : vector<8x16xbf16>, vector<8x128xbf16>, vector<16x128xf32> -> vector<16x128xf32>
    %51 = arith.addf %48, %50 : vector<16x128xf32>
    %c0_27 = arith.constant 0 : index
    %c0_28 = arith.constant 0 : index
    %52 = vector.load %arg16[%c0_27, %c0_28] : memref<16x128xf32, #tpu.memory_space<vmem>>, vector<16x128xf32>
    tpu.vector_store %arg16[%c0_27, %c0_28], %51 {strides = array<i32>} : memref<16x128xf32, #tpu.memory_space<vmem>>, vector<16x128xf32>,
    %c0_29 = arith.constant 0 : index
    %c0_30 = arith.constant 0 : index
    %53 = vector.load %arg17[%c0_29, %c0_30] : memref<16x3xf32, #tpu.memory_space<vmem>>, vector<16x3xf32>
    %54 = arith.truncf %47 : vector<8x3xf32> to vector<8x3xbf16>
    %cst_31 = arith.constant dense<0.000000e+00> : vector<16x3xf32>
    %55 = tpu.matmul %4, %54, %cst_31 {dimension_numbers = #tpu.dot_dimension_numbers<[0], [0], [1], [1], [0, 1, 1, 1], [], []>} : vector<8x16xbf16>, vector<8x3xbf16>, vector<16x3xf32> -> vector<16x3xf32>
    %56 = arith.addf %53, %55 : vector<16x3xf32>
    %c0_32 = arith.constant 0 : index
    %c0_33 = arith.constant 0 : index
    %57 = vector.load %arg17[%c0_32, %c0_33] : memref<16x3xf32, #tpu.memory_space<vmem>>, vector<16x3xf32>
    tpu.vector_store %arg17[%c0_32, %c0_33], %56 {strides = array<i32>} : memref<16x3xf32, #tpu.memory_space<vmem>>, vector<16x3xf32>,
    %c2_i32 = arith.constant 2 : i32
    %58 = arith.cmpi eq, %arg0, %c2_i32 : i32
    %59 = arith.extui %58 : i1 to i32
    %c0_i32_34 = arith.constant 0 : i32
    %60 = arith.cmpi ne, %59, %c0_i32_34 : i32
    scf.if %60 {
      %c0_35 = arith.constant 0 : index
      %c0_36 = arith.constant 0 : index
      %61 = vector.load %arg17[%c0_35, %c0_36] : memref<16x3xf32, #tpu.memory_space<vmem>>, vector<16x3xf32>
      %cst_37 = arith.constant 9.99999971E-10 : f32
      %62 = vector.broadcast %cst_37 : f32 to vector<16x3xf32>
      %63 = arith.addf %61, %62 : vector<16x3xf32>
      %64 = tpu.reciprocal %63 {approx = true} : vector<16x3xf32> -> vector<16x3xf32>
      %c0_38 = arith.constant 0 : index
      %c0_39 = arith.constant 0 : index
      %65 = vector.load %arg16[%c0_38, %c0_39] : memref<16x128xf32, #tpu.memory_space<vmem>>, vector<16x128xf32>
      %66 = vector.extract_strided_slice %65 {offsets = [0, 0], sizes = [16, 32], strides = [1, 1]} : vector<16x128xf32> to vector<16x32xf32>
      %67 = vector.extract_strided_slice %64 {offsets = [0, 0], sizes = [16, 1], strides = [1, 1]} : vector<16x3xf32> to vector<16x1xf32>
      %68 = vector.broadcast %67 : vector<16x1xf32> to vector<16x32xf32>
      %69 = arith.mulf %66, %68 : vector<16x32xf32>
      %70 = vector.extract_strided_slice %65 {offsets = [0, 32], sizes = [16, 32], strides = [1, 1]} : vector<16x128xf32> to vector<16x32xf32>
      %71 = vector.extract_strided_slice %64 {offsets = [0, 1], sizes = [16, 1], strides = [1, 1]} : vector<16x3xf32> to vector<16x1xf32>
      %72 = vector.broadcast %71 : vector<16x1xf32> to vector<16x32xf32>
      %73 = arith.mulf %70, %72 : vector<16x32xf32>
      %74 = vector.extract_strided_slice %65 {offsets = [0, 64], sizes = [16, 32], strides = [1, 1]} : vector<16x128xf32> to vector<16x32xf32>
      %75 = vector.extract_strided_slice %64 {offsets = [0, 2], sizes = [16, 1], strides = [1, 1]} : vector<16x3xf32> to vector<16x1xf32>
      %76 = vector.broadcast %75 : vector<16x1xf32> to vector<16x32xf32>
      %77 = arith.mulf %74, %76 : vector<16x32xf32>
      %78 = vector.extract_strided_slice %65 {offsets = [0, 96], sizes = [16, 32], strides = [1, 1]} : vector<16x128xf32> to vector<16x32xf32>
      %79 = vector.extract_strided_slice %64 {offsets = [0, 2], sizes = [16, 1], strides = [1, 1]} : vector<16x3xf32> to vector<16x1xf32>
      %80 = vector.broadcast %79 : vector<16x1xf32> to vector<16x32xf32>
      %81 = arith.mulf %78, %80 : vector<16x32xf32>
      %82 = tpu.concatenate %69, %73, %77, %81 in 1 : vector<16x32xf32>, vector<16x32xf32>, vector<16x32xf32>, vector<16x32xf32> -> vector<16x128xf32>
      %c0_40 = arith.constant 0 : index
      %c0_41 = arith.constant 0 : index
      %83 = vector.load %arg11[%c0_40, %c0_41] : memref<128x32xf32, #tpu.memory_space<vmem>>, vector<128x32xf32>
      %cst_42 = arith.constant dense<0.000000e+00> : vector<16x32xf32>
      %84 = tpu.matmul %82, %83, %cst_42 {dimension_numbers = #tpu.dot_dimension_numbers<[1], [0], [0], [1], [0, 0, 1, 1], [], []>} : vector<16x128xf32>, vector<128x32xf32>, vector<16x32xf32> -> vector<16x32xf32>
      %c0_43 = arith.constant 0 : index
      %c0_44 = arith.constant 0 : index
      %85 = vector.load %arg12[%c0_43, %c0_44] : memref<1x32xf32, #tpu.memory_space<vmem>>, vector<1x32xf32>
      %86 = vector.broadcast %85 : vector<1x32xf32> to vector<16x32xf32>
      %87 = arith.addf %84, %86 : vector<16x32xf32>
      %cst_45 = arith.constant 0.000000e+00 : f32
      %88 = vector.broadcast %cst_45 : f32 to vector<16x32xf32>
      %89 = arith.maximumf %87, %88 : vector<16x32xf32>
      %c0_46 = arith.constant 0 : index
      %c0_47 = arith.constant 0 : index
      %90 = vector.load %arg13[%c0_46, %c0_47] : memref<16x32xf32, #tpu.memory_space<vmem>>, vector<16x32xf32>
      tpu.vector_store %arg13[%c0_46, %c0_47], %89 {strides = array<i32>} : memref<16x32xf32, #tpu.memory_space<vmem>>, vector<16x32xf32>,
    } else {
    }
    return
  }
  func.func @transform_0(%arg0: i32) -> (i32, i32) {
    %c0_i32 = arith.constant 0 : i32
    %c0_i32_0 = arith.constant 0 : i32
    %c0_i32_1 = arith.constant 0 : i32
    return %c0_i32, %c0_i32_0 : i32, i32
  }
  func.func @transform_1(%arg0: i32) -> (i32, i32) {
    %c0_i32 = arith.constant 0 : i32
    %c0_i32_0 = arith.constant 0 : i32
    return %arg0, %c0_i32 : i32, i32
  }
  func.func @transform_2(%arg0: i32) -> (i32, i32) {
    %c0_i32 = arith.constant 0 : i32
    %c0_i32_0 = arith.constant 0 : i32
    return %arg0, %c0_i32 : i32, i32
  }
  func.func @transform_3(%arg0: i32) -> (i32, i32) {
    %c0_i32 = arith.constant 0 : i32
    %c0_i32_0 = arith.constant 0 : i32
    return %arg0, %c0_i32 : i32, i32
  }
  func.func @transform_4(%arg0: i32) -> (i32, i32) {
    %c0_i32 = arith.constant 0 : i32
    %c0_i32_0 = arith.constant 0 : i32
    %c0_i32_1 = arith.constant 0 : i32
    return %c0_i32, %c0_i32_0 : i32, i32
  }
  func.func @transform_5(%arg0: i32) -> (i32, i32) {
    %c0_i32 = arith.constant 0 : i32
    %c0_i32_0 = arith.constant 0 : i32
    %c0_i32_1 = arith.constant 0 : i32
    return %c0_i32, %c0_i32_0 : i32, i32
  }
  func.func @transform_6(%arg0: i32) -> (i32, i32) {
    %c0_i32 = arith.constant 0 : i32
    %c0_i32_0 = arith.constant 0 : i32
    %c0_i32_1 = arith.constant 0 : i32
    return %c0_i32, %c0_i32_0 : i32, i32
  }
  func.func @transform_7(%arg0: i32) -> (i32, i32) {
    %c0_i32 = arith.constant 0 : i32
    %c0_i32_0 = arith.constant 0 : i32
    %c0_i32_1 = arith.constant 0 : i32
    return %c0_i32, %c0_i32_0 : i32, i32
  }
  func.func @transform_8(%arg0: i32) -> (i32, i32) {
    %c0_i32 = arith.constant 0 : i32
    %c0_i32_0 = arith.constant 0 : i32
    %c0_i32_1 = arith.constant 0 : i32
    return %c0_i32, %c0_i32_0 : i32, i32
  }
  func.func @transform_9(%arg0: i32) -> (i32, i32) {
    %c0_i32 = arith.constant 0 : i32
    %c0_i32_0 = arith.constant 0 : i32
    %c0_i32_1 = arith.constant 0 : i32
    return %c0_i32, %c0_i32_0 : i32, i32
  }
  func.func @transform_10(%arg0: i32) -> (i32, i32) {
    %c0_i32 = arith.constant 0 : i32
    %c0_i32_0 = arith.constant 0 : i32
    %c0_i32_1 = arith.constant 0 : i32
    return %c0_i32, %c0_i32_0 : i32, i32
  }
  func.func @transform_11(%arg0: i32) -> (i32, i32) {
    %c0_i32 = arith.constant 0 : i32
    %c0_i32_0 = arith.constant 0 : i32
    %c0_i32_1 = arith.constant 0 : i32
    return %c0_i32, %c0_i32_0 : i32, i32
  }
  func.func @transform_12(%arg0: i32) -> (i32, i32) {
    %c0_i32 = arith.constant 0 : i32
    %c0_i32_0 = arith.constant 0 : i32
    %c0_i32_1 = arith.constant 0 : i32
    return %c0_i32, %c0_i32_0 : i32, i32
  }
}

</mosaic_0001>

<llo_original>
// kernel: tpu_custom_call.1
$region0: #{tpu_custom_call.1}
  #allocation0 [shape = 'u32[]', space=smem, size = 0x4, offset = 0x4, fixed_abs, tag = 'smem constant byte address 0x4 - core index']
  #allocation1 [shape = 'u32[144,128]{1,0:T(1,128)}', space=vmem, size = 0x12000, scoped, tag = 'internal scratch']
  #allocation2 [shape = 'bf16[16,66]{1,0:T(16,128)(2,1)}', space=vmem, size = 0x1000, scoped, tag = 'scratch operand']
  #allocation3 [shape = 'bf16[16,2]{1,0:T(16,128)(2,1)}', space=vmem, size = 0x1000, scoped, tag = 'scratch operand']
  #allocation4 [shape = 'f32[16,128]{1,0:T(8,128)}', space=vmem, size = 0x2000, scoped, tag = 'scratch operand']
  #allocation5 [shape = 'f32[16,3]{1,0:T(8,128)}', space=vmem, size = 0x2000, scoped, tag = 'scratch operand']
  #allocation6 [shape = 'f32[1,1]{1,0:T(1,128)S(1)}', space=vmem, size = 0x200, scoped, tag = 'scoped memory for tpu_custom_call.1']
  %s0 = inlined_call_operand.vmem [shape: f32[16,16], index: 0, kind: input, shape index: {}]
  %s1 = inlined_call_operand.vmem [shape: bf16[24,16], index: 1, kind: input, shape index: {}]
  %s2 = inlined_call_operand.vmem [shape: bf16[24,16], index: 2, kind: input, shape index: {}]
  %s3 = inlined_call_operand.vmem [shape: f32[24,8], index: 3, kind: input, shape index: {}]
  %s4 = inlined_call_operand.vmem [shape: f32[16,64], index: 4, kind: input, shape index: {}]
  %s5 = inlined_call_operand.vmem [shape: f32[64,4], index: 5, kind: input, shape index: {}]
  %s6 = inlined_call_operand.vmem [shape: f32[8,32], index: 6, kind: input, shape index: {}]
  %s7 = inlined_call_operand.vmem [shape: f32[1,32], index: 7, kind: input, shape index: {}]
  %s8 = inlined_call_operand.vmem [shape: f32[32,1], index: 8, kind: input, shape index: {}]
  %s9 = inlined_call_operand.<no memory space> [shape: f32[1,1], index: 9, kind: input, shape index: {}]
  %s10 = inlined_call_operand.vmem [shape: f32[128,32], index: 10, kind: input, shape index: {}]
  %s11 = inlined_call_operand.vmem [shape: f32[1,32], index: 11, kind: input, shape index: {}]
  %s12 = inlined_call_operand.hbm [shape: f32[16,32], index: 12, kind: output, shape index: {}]
  %s13 = sld [smem:[#allocation0]]
  $region89: #{tpu_custom_call.1} parent=0
    _
  %s15 = ssub.s32 1, %s13
  %s16 = scalar_select 0, %s15, %s13
  %v17 = vstv %s9
  %18 = vst [vmem:[#allocation6] sm:$0x1] %v17
  $region1: #{tpu_custom_call.1} parent=0
    #allocation7 [shape = 'u8[8192]{0}', space=vmem, size = 0x2000, scoped, tag = 'output window, operand 0, single buffered']
    #allocation8 [shape = 's32[2]{0}', space=sflag, size = 0x8, scoped, tag = 'scoped memory for tpu_custom_call.1']
    %19 = vsyncpa [#allocation8], 0
    loop: start=0, step=1, limit=5
    $region2: #{tpu_custom_call.1} parent=1 // loop_pre_header
      _
    $region3: #{tpu_custom_call.1} parent=1 // loop_header
      %s21 = sphi 0, %s25
      %p22 = scmp.ge.s32.totalorder %s21, 5
      %s29 = sphi 0, %s29
      %s31 = sphi 0, %s29
      %s32 = sphi 0, %s31
      %s46 = sphi 0, %s32
      %s52 = sphi 0, %s54
      %s55 = sphi 0, %s52
      %s56 = sphi 0, %s55
      %s72 = sphi 0, %s56
      %s78 = sphi 0, %s80
      %s81 = sphi 0, %s78
      %s82 = sphi 0, %s81
      %s98 = sphi 0, %s82
      %s104 = sphi 0, %s106
      %s107 = sphi 0, %s104
      %s108 = sphi 0, %s107
      %s124 = sphi 0, %s108
      %s128 = sphi 0, %s128
      %s130 = sphi 0, %s128
      %s131 = sphi 0, %s130
      %s145 = sphi 0, %s131
      %s149 = sphi 0, %s149
      %s151 = sphi 0, %s149
      %s152 = sphi 0, %s151
      %s166 = sphi 0, %s152
      %s170 = sphi 0, %s170
      %s172 = sphi 0, %s170
      %s173 = sphi 0, %s172
      %s187 = sphi 0, %s173
      %s191 = sphi 0, %s191
      %s193 = sphi 0, %s191
      %s194 = sphi 0, %s193
      %s208 = sphi 0, %s194
      %s212 = sphi 0, %s212
      %s214 = sphi 0, %s212
      %s215 = sphi 0, %s214
      %s229 = sphi 0, %s215
      %s233 = sphi 0, %s233
      %s235 = sphi 0, %s233
      %s236 = sphi 0, %s235
      %s250 = sphi 0, %s236
      %s254 = sphi 0, %s254
      %s256 = sphi 0, %s254
      %s257 = sphi 0, %s256
      %s271 = sphi 0, %s257
      %s275 = sphi 0, %s275
      %s277 = sphi 0, %s275
      %s278 = sphi 0, %s277
      %s292 = sphi 0, %s278
      %s296 = sphi 0, %s296
      %s298 = sphi 0, %s296
      %s299 = sphi 0, %s298
      %s313 = sphi 0, %s299
    $region4: #{tpu_custom_call.1} parent=1 // loop_header_branch
      %24 = sbr.rel (%p22) target = $region8
    $region5: #{tpu_custom_call.1} parent=1 // loop_body
      %s26 = ssub.s32 %s21, 1
      %s27 = ssub.s32 %s21, 2
      %s28 = sadd.s32 %s21, 1
      %s30 = sadd.s32 %s29, 1
      %p33 = scmp.eq.s32.totalorder %s21, 2
      %p34 = scmp.ne.s32.totalorder %s29, %s31
      %p35 = scmp.eq.s32.totalorder %s21, 0
      %p36 = por %p34, %p35
      %p37 = scmp.ne.s32.totalorder %s29, %s31
      %p38 = scmp.eq.s32.totalorder %s26, 2
      %p39 = por %p37, %p38
      %p40 = scmp.ne.s32.totalorder %s31, %s32
      %p41 = scmp.eq.s32.totalorder %s26, 0
      %p42 = por %p40, %p41
      %p43 = scmp.ne.s32.totalorder %s31, %s32
      %p44 = scmp.eq.s32.totalorder %s27, 2
      %p45 = por %p43, %p44
      %p47 = scmp.ne.s32.totalorder %s32, %s46
      %p48 = scmp.eq.s32.totalorder %s27, 0
      %p49 = por %p47, %p48
      %s50 = ssub.s32 %s21, %s28
      %p51 = scmp.eq.s32.totalorder %s50, 0
      %s53 = sadd.s32 %s52, 1
      %s54 = scalar_select %p51, %s52, %s53
      %p57 = pneg %p51
      %p58 = scmp.eq.s32.totalorder %s21, 2
      %p59 = por %p57, %p58
      %p60 = scmp.ne.s32.totalorder %s52, %s55
      %p61 = scmp.eq.s32.totalorder %s21, 0
      %p62 = por %p60, %p61
      %p63 = scmp.ne.s32.totalorder %s52, %s55
      %p64 = scmp.eq.s32.totalorder %s26, 2
      %p65 = por %p63, %p64
      %p66 = scmp.ne.s32.totalorder %s55, %s56
      %p67 = scmp.eq.s32.totalorder %s26, 0
      %p68 = por %p66, %p67
      %p69 = scmp.ne.s32.totalorder %s55, %s56
      %p70 = scmp.eq.s32.totalorder %s27, 2
      %p71 = por %p69, %p70
      %p73 = scmp.ne.s32.totalorder %s56, %s72
      %p74 = scmp.eq.s32.totalorder %s27, 0
      %p75 = por %p73, %p74
      %s76 = ssub.s32 %s21, %s28
      %p77 = scmp.eq.s32.totalorder %s76, 0
      %s79 = sadd.s32 %s78, 1
      %s80 = scalar_select %p77, %s78, %s79
      %p83 = pneg %p77
      %p84 = scmp.eq.s32.totalorder %s21, 2
      %p85 = por %p83, %p84
      %p86 = scmp.ne.s32.totalorder %s78, %s81
      %p87 = scmp.eq.s32.totalorder %s21, 0
      %p88 = por %p86, %p87
      %p89 = scmp.ne.s32.totalorder %s78, %s81
      %p90 = scmp.eq.s32.totalorder %s26, 2
      %p91 = por %p89, %p90
      %p92 = scmp.ne.s32.totalorder %s81, %s82
      %p93 = scmp.eq.s32.totalorder %s26, 0
      %p94 = por %p92, %p93
      %p95 = scmp.ne.s32.totalorder %s81, %s82
      %p96 = scmp.eq.s32.totalorder %s27, 2
      %p97 = por %p95, %p96
      %p99 = scmp.ne.s32.totalorder %s82, %s98
      %p100 = scmp.eq.s32.totalorder %s27, 0
      %p101 = por %p99, %p100
      %s102 = ssub.s32 %s21, %s28
      %p103 = scmp.eq.s32.totalorder %s102, 0
      %s105 = sadd.s32 %s104, 1
      %s106 = scalar_select %p103, %s104, %s105
      %p109 = pneg %p103
      %p110 = scmp.eq.s32.totalorder %s21, 2
      %p111 = por %p109, %p110
      %p112 = scmp.ne.s32.totalorder %s104, %s107
      %p113 = scmp.eq.s32.totalorder %s21, 0
      %p114 = por %p112, %p113
      %p115 = scmp.ne.s32.totalorder %s104, %s107
      %p116 = scmp.eq.s32.totalorder %s26, 2
      %p117 = por %p115, %p116
      %p118 = scmp.ne.s32.totalorder %s107, %s108
      %p119 = scmp.eq.s32.totalorder %s26, 0
      %p120 = por %p118, %p119
      %p121 = scmp.ne.s32.totalorder %s107, %s108
      %p122 = scmp.eq.s32.totalorder %s27, 2
      %p123 = por %p121, %p122
      %p125 = scmp.ne.s32.totalorder %s108, %s124
      %p126 = scmp.eq.s32.totalorder %s27, 0
      %p127 = por %p125, %p126
      %s129 = sadd.s32 %s128, 1
      %p132 = scmp.eq.s32.totalorder %s21, 2
      %p133 = scmp.ne.s32.totalorder %s128, %s130
      %p134 = scmp.eq.s32.totalorder %s21, 0
      %p135 = por %p133, %p134
      %p136 = scmp.ne.s32.totalorder %s128, %s130
      %p137 = scmp.eq.s32.totalorder %s26, 2
      %p138 = por %p136, %p137
      %p139 = scmp.ne.s32.totalorder %s130, %s131
      %p140 = scmp.eq.s32.totalorder %s26, 0
      %p141 = por %p139, %p140
      %p142 = scmp.ne.s32.totalorder %s130, %s131
      %p143 = scmp.eq.s32.totalorder %s27, 2
      %p144 = por %p142, %p143
      %p146 = scmp.ne.s32.totalorder %s131, %s145
      %p147 = scmp.eq.s32.totalorder %s27, 0
      %p148 = por %p146, %p147
      %s150 = sadd.s32 %s149, 1
      %p153 = scmp.eq.s32.totalorder %s21, 2
      %p154 = scmp.ne.s32.totalorder %s149, %s151
      %p155 = scmp.eq.s32.totalorder %s21, 0
      %p156 = por %p154, %p155
      %p157 = scmp.ne.s32.totalorder %s149, %s151
      %p158 = scmp.eq.s32.totalorder %s26, 2
      %p159 = por %p157, %p158
      %p160 = scmp.ne.s32.totalorder %s151, %s152
      %p161 = scmp.eq.s32.totalorder %s26, 0
      %p162 = por %p160, %p161
      %p163 = scmp.ne.s32.totalorder %s151, %s152
      %p164 = scmp.eq.s32.totalorder %s27, 2
      %p165 = por %p163, %p164
      %p167 = scmp.ne.s32.totalorder %s152, %s166
      %p168 = scmp.eq.s32.totalorder %s27, 0
      %p169 = por %p167, %p168
      %s171 = sadd.s32 %s170, 1
      %p174 = scmp.eq.s32.totalorder %s21, 2
      %p175 = scmp.ne.s32.totalorder %s170, %s172
      %p176 = scmp.eq.s32.totalorder %s21, 0
      %p177 = por %p175, %p176
      %p178 = scmp.ne.s32.totalorder %s170, %s172
      %p179 = scmp.eq.s32.totalorder %s26, 2
      %p180 = por %p178, %p179
      %p181 = scmp.ne.s32.totalorder %s172, %s173
      %p182 = scmp.eq.s32.totalorder %s26, 0
      %p183 = por %p181, %p182
      %p184 = scmp.ne.s32.totalorder %s172, %s173
      %p185 = scmp.eq.s32.totalorder %s27, 2
      %p186 = por %p184, %p185
      %p188 = scmp.ne.s32.totalorder %s173, %s187
      %p189 = scmp.eq.s32.totalorder %s27, 0
      %p190 = por %p188, %p189
      %s192 = sadd.s32 %s191, 1
      %p195 = scmp.eq.s32.totalorder %s21, 2
      %p196 = scmp.ne.s32.totalorder %s191, %s193
      %p197 = scmp.eq.s32.totalorder %s21, 0
      %p198 = por %p196, %p197
      %p199 = scmp.ne.s32.totalorder %s191, %s193
      %p200 = scmp.eq.s32.totalorder %s26, 2
      %p201 = por %p199, %p200
      %p202 = scmp.ne.s32.totalorder %s193, %s194
      %p203 = scmp.eq.s32.totalorder %s26, 0
      %p204 = por %p202, %p203
      %p205 = scmp.ne.s32.totalorder %s193, %s194
      %p206 = scmp.eq.s32.totalorder %s27, 2
      %p207 = por %p205, %p206
      %p209 = scmp.ne.s32.totalorder %s194, %s208
      %p210 = scmp.eq.s32.totalorder %s27, 0
      %p211 = por %p209, %p210
      %s213 = sadd.s32 %s212, 1
      %p216 = scmp.eq.s32.totalorder %s21, 2
      %p217 = scmp.ne.s32.totalorder %s212, %s214
      %p218 = scmp.eq.s32.totalorder %s21, 0
      %p219 = por %p217, %p218
      %p220 = scmp.ne.s32.totalorder %s212, %s214
      %p221 = scmp.eq.s32.totalorder %s26, 2
      %p222 = por %p220, %p221
      %p223 = scmp.ne.s32.totalorder %s214, %s215
      %p224 = scmp.eq.s32.totalorder %s26, 0
      %p225 = por %p223, %p224
      %p226 = scmp.ne.s32.totalorder %s214, %s215
      %p227 = scmp.eq.s32.totalorder %s27, 2
      %p228 = por %p226, %p227
      %p230 = scmp.ne.s32.totalorder %s215, %s229
      %p231 = scmp.eq.s32.totalorder %s27, 0
      %p232 = por %p230, %p231
      %s234 = sadd.s32 %s233, 1
      %p237 = scmp.eq.s32.totalorder %s21, 2
      %p238 = scmp.ne.s32.totalorder %s233, %s235
      %p239 = scmp.eq.s32.totalorder %s21, 0
      %p240 = por %p238, %p239
      %p241 = scmp.ne.s32.totalorder %s233, %s235
      %p242 = scmp.eq.s32.totalorder %s26, 2
      %p243 = por %p241, %p242
      %p244 = scmp.ne.s32.totalorder %s235, %s236
      %p245 = scmp.eq.s32.totalorder %s26, 0
      %p246 = por %p244, %p245
      %p247 = scmp.ne.s32.totalorder %s235, %s236
      %p248 = scmp.eq.s32.totalorder %s27, 2
      %p249 = por %p247, %p248
      %p251 = scmp.ne.s32.totalorder %s236, %s250
      %p252 = scmp.eq.s32.totalorder %s27, 0
      %p253 = por %p251, %p252
      %s255 = sadd.s32 %s254, 1
      %p258 = scmp.eq.s32.totalorder %s21, 2
      %p259 = scmp.ne.s32.totalorder %s254, %s256
      %p260 = scmp.eq.s32.totalorder %s21, 0
      %p261 = por %p259, %p260
      %p262 = scmp.ne.s32.totalorder %s254, %s256
      %p263 = scmp.eq.s32.totalorder %s26, 2
      %p264 = por %p262, %p263
      %p265 = scmp.ne.s32.totalorder %s256, %s257
      %p266 = scmp.eq.s32.totalorder %s26, 0
      %p267 = por %p265, %p266
      %p268 = scmp.ne.s32.totalorder %s256, %s257
      %p269 = scmp.eq.s32.totalorder %s27, 2
      %p270 = por %p268, %p269
      %p272 = scmp.ne.s32.totalorder %s257, %s271
      %p273 = scmp.eq.s32.totalorder %s27, 0
      %p274 = por %p272, %p273
      %s276 = sadd.s32 %s275, 1
      %p279 = scmp.eq.s32.totalorder %s21, 2
      %p280 = scmp.ne.s32.totalorder %s275, %s277
      %p281 = scmp.eq.s32.totalorder %s21, 0
      %p282 = por %p280, %p281
      %p283 = scmp.ne.s32.totalorder %s275, %s277
      %p284 = scmp.eq.s32.totalorder %s26, 2
      %p285 = por %p283, %p284
      %p286 = scmp.ne.s32.totalorder %s277, %s278
      %p287 = scmp.eq.s32.totalorder %s26, 0
      %p288 = por %p286, %p287
      %p289 = scmp.ne.s32.totalorder %s277, %s278
      %p290 = scmp.eq.s32.totalorder %s27, 2
      %p291 = por %p289, %p290
      %p293 = scmp.ne.s32.totalorder %s278, %s292
      %p294 = scmp.eq.s32.totalorder %s27, 0
      %p295 = por %p293, %p294
      %s297 = sadd.s32 %s296, 1
      %p300 = scmp.eq.s32.totalorder %s21, 2
      %p301 = scmp.ne.s32.totalorder %s296, %s298
      %p302 = scmp.eq.s32.totalorder %s21, 0
      %p303 = por %p301, %p302
      %p304 = scmp.ne.s32.totalorder %s296, %s298
      %p305 = scmp.eq.s32.totalorder %s26, 2
      %p306 = por %p304, %p305
      %p307 = scmp.ne.s32.totalorder %s298, %s299
      %p308 = scmp.eq.s32.totalorder %s26, 0
      %p309 = por %p307, %p308
      %p310 = scmp.ne.s32.totalorder %s298, %s299
      %p311 = scmp.eq.s32.totalorder %s27, 2
      %p312 = por %p310, %p311
      %p314 = scmp.ne.s32.totalorder %s299, %s313
      %p315 = scmp.eq.s32.totalorder %s27, 0
      %p316 = por %p314, %p315
      %p317 = scmp.le.s32.totalorder 1, %s21
      %p318 = scmp.lt.s32.totalorder %s21, 4
      %p319 = pnand %p317, %p318
      %p320 = pneg %p319
      // Predicated region
      $region9: #{tpu_custom_call.1} parent=5 // pred_check
        _
      $region10: #{tpu_custom_call.1} parent=5 // pred_check_branch
        %322 = sbr.rel (%p319) target = $region12
      $region11: #{tpu_custom_call.1} parent=5 // pred_region
        %s323 = ssub.s32 %s21, 1
        // Predicated region
        $region13: #{tpu_custom_call.1} parent=11 // pred_check
          %p324 = pneg %p42
        $region14: #{tpu_custom_call.1} parent=11 // pred_check_branch
          %326 = sbr.rel (%p324) target = $region16
        $region15: #{tpu_custom_call.1} parent=11 // pred_region
          _
        $region16: #{tpu_custom_call.1} parent=11 // pred_fallthru
          _
        // Predicated region
        $region17: #{tpu_custom_call.1} parent=11 // pred_check
          %p327 = pneg %p141
        $region18: #{tpu_custom_call.1} parent=11 // pred_check_branch
          %329 = sbr.rel (%p327) target = $region20
        $region19: #{tpu_custom_call.1} parent=11 // pred_region
          _
        $region20: #{tpu_custom_call.1} parent=11 // pred_fallthru
          _
        // Predicated region
        $region21: #{tpu_custom_call.1} parent=11 // pred_check
          %p330 = pneg %p162
        $region22: #{tpu_custom_call.1} parent=11 // pred_check_branch
          %332 = sbr.rel (%p330) target = $region24
        $region23: #{tpu_custom_call.1} parent=11 // pred_region
          _
        $region24: #{tpu_custom_call.1} parent=11 // pred_fallthru
          _
        // Predicated region
        $region25: #{tpu_custom_call.1} parent=11 // pred_check
          %p333 = pneg %p183
        $region26: #{tpu_custom_call.1} parent=11 // pred_check_branch
          %335 = sbr.rel (%p333) target = $region28
        $region27: #{tpu_custom_call.1} parent=11 // pred_region
          _
        $region28: #{tpu_custom_call.1} parent=11 // pred_fallthru
          _
        // Predicated region
        $region29: #{tpu_custom_call.1} parent=11 // pred_check
          %p336 = pneg %p204
        $region30: #{tpu_custom_call.1} parent=11 // pred_check_branch
          %338 = sbr.rel (%p336) target = $region32
        $region31: #{tpu_custom_call.1} parent=11 // pred_region
          _
        $region32: #{tpu_custom_call.1} parent=11 // pred_fallthru
          _
        // Predicated region
        $region33: #{tpu_custom_call.1} parent=11 // pred_check
          %p339 = pneg %p225
        $region34: #{tpu_custom_call.1} parent=11 // pred_check_branch
          %341 = sbr.rel (%p339) target = $region36
        $region35: #{tpu_custom_call.1} parent=11 // pred_region
          _
        $region36: #{tpu_custom_call.1} parent=11 // pred_fallthru
          _
        // Predicated region
        $region37: #{tpu_custom_call.1} parent=11 // pred_check
          %p342 = pneg %p246
        $region38: #{tpu_custom_call.1} parent=11 // pred_check_branch
          %344 = sbr.rel (%p342) target = $region40
        $region39: #{tpu_custom_call.1} parent=11 // pred_region
          _
        $region40: #{tpu_custom_call.1} parent=11 // pred_fallthru
          _
        // Predicated region
        $region41: #{tpu_custom_call.1} parent=11 // pred_check
          %p345 = pneg %p267
        $region42: #{tpu_custom_call.1} parent=11 // pred_check_branch
          %347 = sbr.rel (%p345) target = $region44
        $region43: #{tpu_custom_call.1} parent=11 // pred_region
          _
        $region44: #{tpu_custom_call.1} parent=11 // pred_fallthru
          _
        // Predicated region
        $region45: #{tpu_custom_call.1} parent=11 // pred_check
          %p348 = pneg %p288
        $region46: #{tpu_custom_call.1} parent=11 // pred_check_branch
          %350 = sbr.rel (%p348) target = $region48
        $region47: #{tpu_custom_call.1} parent=11 // pred_region
          _
        $region48: #{tpu_custom_call.1} parent=11 // pred_fallthru
          _
      $region12: #{tpu_custom_call.1} parent=5 // pred_fallthru
        _
      %p351 = scmp.lt.s32.totalorder %s21, 3
      // Predicated region
      $region49: #{tpu_custom_call.1} parent=5 // pred_check
        %p352 = pneg %p351
      $region50: #{tpu_custom_call.1} parent=5 // pred_check_branch
        %354 = sbr.rel (%p352) target = $region52
      $region51: #{tpu_custom_call.1} parent=5 // pred_region
        // Predicated region
        $region53: #{tpu_custom_call.1} parent=51 // pred_check
          %p355 = pneg %p62
        $region54: #{tpu_custom_call.1} parent=51 // pred_check_branch
          %357 = sbr.rel (%p355) target = $region56
        $region55: #{tpu_custom_call.1} parent=51 // pred_region
          %p358 = scmp.lt.s32.totalorder %s21, 2
          %s359 = scalar_select %p358, %s21, 2
          %s360 = smul.addr %s359, 4
          %s361 = scalar_lea.vmem %s1, %s360
        $region56: #{tpu_custom_call.1} parent=51 // pred_fallthru
          _
        // Predicated region
        $region57: #{tpu_custom_call.1} parent=51 // pred_check
          %p362 = pneg %p88
        $region58: #{tpu_custom_call.1} parent=51 // pred_check_branch
          %364 = sbr.rel (%p362) target = $region60
        $region59: #{tpu_custom_call.1} parent=51 // pred_region
          %p365 = scmp.lt.s32.totalorder %s21, 2
          %s366 = scalar_select %p365, %s21, 2
          %s367 = smul.addr %s366, 4
          %s368 = scalar_lea.vmem %s2, %s367
        $region60: #{tpu_custom_call.1} parent=51 // pred_fallthru
          _
        // Predicated region
        $region61: #{tpu_custom_call.1} parent=51 // pred_check
          %p369 = pneg %p114
        $region62: #{tpu_custom_call.1} parent=51 // pred_check_branch
          %371 = sbr.rel (%p369) target = $region64
        $region63: #{tpu_custom_call.1} parent=51 // pred_region
          %p372 = scmp.lt.s32.totalorder %s21, 2
          %s373 = scalar_select %p372, %s21, 2
          %s374 = smul.addr %s373, 8
          %s375 = scalar_lea.vmem %s3, %s374
        $region64: #{tpu_custom_call.1} parent=51 // pred_fallthru
          _
      $region52: #{tpu_custom_call.1} parent=5 // pred_fallthru
        _
      %p376 = scmp.le.s32.totalorder 1, %s21
      %p377 = scmp.lt.s32.totalorder %s21, 4
      %p378 = pnand %p376, %p377
      %p379 = pneg %p378
      // Predicated region
      $region65: #{tpu_custom_call.1} parent=5 // pred_check
        _
      $region66: #{tpu_custom_call.1} parent=5 // pred_check_branch
        %381 = sbr.rel (%p378) target = $region68
      $region67: #{tpu_custom_call.1} parent=5 // pred_region
        %s382 = ssub.s32 %s21, 1
        %p383 = pneg %p42
        %p384 = pneg %p39
        %p385 = scmp.lt.s32.totalorder %s26, 2
        %s386 = scalar_select %p385, %s26, 2
        %s387 = smul.addr %s386, 4
        %s388 = scalar_lea.vmem %s1, %s387
        %p389 = pneg %p68
        %p390 = pneg %p65
        %p391 = scmp.lt.s32.totalorder %s26, 2
        %s392 = scalar_select %p391, %s26, 2
        %s393 = smul.addr %s392, 4
        %s394 = scalar_lea.vmem %s2, %s393
        %p395 = pneg %p94
        %p396 = pneg %p91
        %p397 = scmp.lt.s32.totalorder %s26, 2
        %s398 = scalar_select %p397, %s26, 2
        %s399 = smul.addr %s398, 8
        %s400 = scalar_lea.vmem %s3, %s399
        %p401 = pneg %p120
        %p402 = pneg %p117
        %p403 = pneg %p141
        %p404 = pneg %p138
        %p405 = pneg %p162
        %p406 = pneg %p159
        %p407 = pneg %p183
        %p408 = pneg %p180
        %p409 = pneg %p204
        %p410 = pneg %p201
        %p411 = pneg %p225
        %p412 = pneg %p222
        %p413 = pneg %p246
        %p414 = pneg %p243
        %p415 = pneg %p267
        %p416 = pneg %p264
        %p417 = pneg %p288
        %p418 = pneg %p285
        %p419 = pneg %p309
        %p420 = pneg %p306
        %p421 = scmp.lt.s32.totalorder %s26, 2
        %s422 = scalar_select %p421, %s26, 2
        %s423 = smul.addr %s422, 4
        %s424 = scalar_lea.vmem %s1, %s423
        %p425 = scmp.lt.s32.totalorder %s26, 2
        %s426 = scalar_select %p425, %s26, 2
        %s427 = smul.addr %s426, 4
        %s428 = scalar_lea.vmem %s2, %s427
        %p429 = scmp.lt.s32.totalorder %s26, 2
        %s430 = scalar_select %p429, %s26, 2
        %s431 = smul.addr %s430, 8
        %s432 = scalar_lea.vmem %s3, %s431
        %p434 = scmp.eq.s32.totalorder %s26, 0
        // Predicated region
        $region69: #{tpu_custom_call.1} parent=67 // pred_check
          %p435 = pneg %p434
        $region70: #{tpu_custom_call.1} parent=67 // pred_check_branch
          %437 = sbr.rel (%p435) target = $region72
        $region71: #{tpu_custom_call.1} parent=67 // pred_region
          %438 = vst [vmem:[#allocation4] sm:$0xff] 0.0
          %439 = vst [vmem:[#allocation4 + $0x8] sm:$0xff] 0.0
          %vm440 = vcmask 23552
          %441 = vst.msk [vmem:[#allocation5] sm:$0xff] %vm440, 0.0
          %442 = vst.msk [vmem:[#allocation5 + $0x8] sm:$0xff] %vm440, 0.0
          %v443 = vld [vmem:[%s0] sm:$0xff]
          %v444 = vld [vmem:[%s0 + $0x8] sm:$0xff]
          %v445 = vld [vmem:[%s4] sm:$0xff]
          %v446 = vld [vmem:[%s4 + $0x8] sm:$0xff]
          %vm447 = vcmask 130048
          %v449 = vsel %vm447, %v443, 0
          %v452 = vsel %vm447, %v444, 0
          %454 = vmatprep.subr.mxu0 0.0
          %455 = vmatpush1.msra.mxu0 %v445
          %456 = vmatprep.subr.mxu0 0.0
          %457 = vmatpush1.msra.mxu0 %v446
          %458 = vmatprep.subr.mxu0 0.0
          %459 = vmatpush1.msra.mxu0 0.0
          %460 = vmatprep.subr.mxu0 0.0
          %461 = vmatpush1.msra.mxu0 0.0
          %462 = vmatprep.subr.mxu0 0.0
          %463 = vmatpush1.msra.mxu0 0.0
          %464 = vmatprep.subr.mxu0 0.0
          %465 = vmatpush1.msra.mxu0 0.0
          %466 = vmatprep.subr.mxu0 0.0
          %467 = vmatpush1.msra.mxu0 0.0
          %468 = vmatprep.subr.mxu0 0.0
          %469 = vmatpush1.msra.mxu0 0.0
          %470 = vmatprep.subr.mxu0 0.0
          %471 = vmatpush1.msra.mxu0 0.0
          %472 = vmatprep.subr.mxu0 0.0
          %473 = vmatpush1.msra.mxu0 0.0
          %474 = vmatprep.subr.mxu0 0.0
          %475 = vmatpush1.msra.mxu0 0.0
          %476 = vmatprep.subr.mxu0 0.0
          %477 = vmatpush1.msra.mxu0 0.0
          %478 = vmatprep.subr.mxu0 0.0
          %479 = vmatpush1.msra.mxu0 0.0
          %480 = vmatprep.subr.mxu0 0.0
          %481 = vmatpush1.msra.mxu0 0.0
          %482 = vmatprep.subr.mxu0 0.0
          %483 = vmatpush1.msra.mxu0 0.0
          %484 = vmatprep.subr.mxu0 0.0
          %485 = vmatpush1.msra.mxu0 0.0
          %486 = vmatprep.subr.mxu0 0.0
          %487 = vmatpush1.msra.mxu0 0.0
          %488 = vmatprep.subr.mxu0 0.0
          %489 = vmatpush1.msra.mxu0 0.0
          %490 = vmatprep.subr.mxu0 0.0
          %491 = vmatpush1.msra.mxu0 0.0
          %492 = vmatprep.subr.mxu0 0.0
          %493 = vmatpush1.msra.mxu0 0.0
          %494 = vmatprep.subr.mxu0 0.0
          %495 = vmatpush1.msra.mxu0 0.0
          %496 = vmatprep.subr.mxu0 0.0
          %497 = vmatpush1.msra.mxu0 0.0
          %498 = vmatprep.subr.mxu0 0.0
          %499 = vmatpush1.msra.mxu0 0.0
          %500 = vmatprep.subr.mxu0 0.0
          %501 = vmatpush1.msra.mxu0 0.0
          %502 = vmatprep.subr.mxu0 0.0
          %503 = vmatpush1.msra.mxu0 0.0
          %504 = vmatprep.subr.mxu0 0.0
          %505 = vmatpush1.msra.mxu0 0.0
          %506 = vmatprep.subr.mxu0 0.0
          %507 = vmatpush1.msra.mxu0 0.0
          %508 = vmatprep.subr.mxu0 0.0
          %509 = vmatpush1.msra.mxu0 0.0
          %510 = vmatprep.subr.mxu0 0.0
          %511 = vmatpush1.msra.mxu0 0.0
          %512 = vmatprep.subr.mxu0 0.0
          %513 = vmatpush1.msra.mxu0 0.0
          %514 = vmatprep.subr.mxu0 0.0
          %515 = vmatpush1.msra.mxu0 0.0
          %516 = vmatprep.subr.mxu0 0.0
          %517 = vmatpush1.msra.mxu0 0.0
          %518 = vmatprep.mubr.f32.mxu0 0.0
          %519 = vmatmul.mubr.f32.gmra.mrb[0].mxu0 %v449
          %v520 = vpop.f32.mrb[0].mxu0
          %v521 = vadd.f32 0.0, %v520
          %v522 = vpop.f32.mrb[0].mxu0
          %523 = vmatprep.mubr.f32.mxu0 0.0
          %524 = vmatmul.mubr.f32.gmra.mrb[0].mxu0 %v452
          %v525 = vpop.f32.mrb[0].mxu0
          %v526 = vadd.f32 0.0, %v525
          %v527 = vpop.f32.mrb[0].mxu0
          %528 = vdwg.mxu0
          %v529 = vld [vmem:[%s5] sm:$0xff]
          %v530 = vld [vmem:[%s5 + $0x8] sm:$0xff]
          %v531 = vld [vmem:[%s5 + $0x10] sm:$0xff]
          %v532 = vld [vmem:[%s5 + $0x18] sm:$0xff]
          %v533 = vld [vmem:[%s5 + $0x20] sm:$0xff]
          %v534 = vld [vmem:[%s5 + $0x28] sm:$0xff]
          %v535 = vld [vmem:[%s5 + $0x30] sm:$0xff]
          %v536 = vld [vmem:[%s5 + $0x38] sm:$0xff]
          %vm537 = vcmask 523264
          %v539 = vsel %vm537, %v521, 0
          %v542 = vsel %vm537, %v526, 0
          %544 = vmatprep.subr.mxu0 0.0
          %545 = vmatpush1.msra.mxu0 %v529
          %546 = vmatprep.subr.mxu0 0.0
          %547 = vmatpush1.msra.mxu0 %v530
          %548 = vmatprep.subr.mxu0 0.0
          %549 = vmatpush1.msra.mxu0 %v531
          %550 = vmatprep.subr.mxu0 0.0
          %551 = vmatpush1.msra.mxu0 %v532
          %552 = vmatprep.subr.mxu0 0.0
          %553 = vmatpush1.msra.mxu0 %v533
          %554 = vmatprep.subr.mxu0 0.0
          %555 = vmatpush1.msra.mxu0 %v534
          %556 = vmatprep.subr.mxu0 0.0
          %557 = vmatpush1.msra.mxu0 %v535
          %558 = vmatprep.subr.mxu0 0.0
          %559 = vmatpush1.msra.mxu0 %v536
          %560 = vmatprep.subr.mxu0 0.0
          %561 = vmatpush1.msra.mxu0 0.0
          %562 = vmatprep.subr.mxu0 0.0
          %563 = vmatpush1.msra.mxu0 0.0
          %564 = vmatprep.subr.mxu0 0.0
          %565 = vmatpush1.msra.mxu0 0.0
          %566 = vmatprep.subr.mxu0 0.0
          %567 = vmatpush1.msra.mxu0 0.0
          %568 = vmatprep.subr.mxu0 0.0
          %569 = vmatpush1.msra.mxu0 0.0
          %570 = vmatprep.subr.mxu0 0.0
          %571 = vmatpush1.msra.mxu0 0.0
          %572 = vmatprep.subr.mxu0 0.0
          %573 = vmatpush1.msra.mxu0 0.0
          %574 = vmatprep.subr.mxu0 0.0
          %575 = vmatpush1.msra.mxu0 0.0
          %576 = vmatprep.subr.mxu0 0.0
          %577 = vmatpush1.msra.mxu0 0.0
          %578 = vmatprep.subr.mxu0 0.0
          %579 = vmatpush1.msra.mxu0 0.0
          %580 = vmatprep.subr.mxu0 0.0
          %581 = vmatpush1.msra.mxu0 0.0
          %582 = vmatprep.subr.mxu0 0.0
          %583 = vmatpush1.msra.mxu0 0.0
          %584 = vmatprep.subr.mxu0 0.0
          %585 = vmatpush1.msra.mxu0 0.0
          %586 = vmatprep.subr.mxu0 0.0
          %587 = vmatpush1.msra.mxu0 0.0
          %588 = vmatprep.subr.mxu0 0.0
          %589 = vmatpush1.msra.mxu0 0.0
          %590 = vmatprep.subr.mxu0 0.0
          %591 = vmatpush1.msra.mxu0 0.0
          %592 = vmatprep.subr.mxu0 0.0
          %593 = vmatpush1.msra.mxu0 0.0
          %594 = vmatprep.subr.mxu0 0.0
          %595 = vmatpush1.msra.mxu0 0.0
          %596 = vmatprep.subr.mxu0 0.0
          %597 = vmatpush1.msra.mxu0 0.0
          %598 = vmatprep.subr.mxu0 0.0
          %599 = vmatpush1.msra.mxu0 0.0
          %600 = vmatprep.subr.mxu0 0.0
          %601 = vmatpush1.msra.mxu0 0.0
          %602 = vmatprep.subr.mxu0 0.0
          %603 = vmatpush1.msra.mxu0 0.0
          %604 = vmatprep.subr.mxu0 0.0
          %605 = vmatpush1.msra.mxu0 0.0
          %606 = vmatprep.subr.mxu0 0.0
          %607 = vmatpush1.msra.mxu0 0.0
          %608 = vmatprep.mubr.f32.mxu0 0.0
          %609 = vmatmul.mubr.f32.gmra.mrb[0].mxu0 %v539
          %v610 = vpop.f32.mrb[0].mxu0
          %v611 = vadd.f32 0.0, %v610
          %v612 = vpop.f32.mrb[0].mxu0
          %613 = vmatprep.mubr.f32.mxu0 0.0
          %614 = vmatmul.mubr.f32.gmra.mrb[0].mxu0 %v542
          %v615 = vpop.f32.mrb[0].mxu0
          %v616 = vadd.f32 0.0, %v615
          %v617 = vpop.f32.mrb[0].mxu0
          %618 = vdwg.mxu0
          %621 = vrot.lane.b32.xlu0 %v611, 64
          %v622 = vpop.permute.xlu0 %621
          %623 = vrot.lane.b32.xlu0 %v616, 64
          %v624 = vpop.permute.xlu0 %623
          %v627 = vsel %vm537, %v521, %v622
          %v628 = vsel %vm537, %v526, %v624
          %v629 = vpack.c.bf16 %v628, %v627
          %vm630 = vcmask 539648
          %631 = vst.msk [vmem:[#allocation2] sm:$0xff] %vm630, %v629
          %v632 = vpack.c.bf16 %v616, %v611
          %634 = vrot.lane.b32.xlu0 %v632, 126
          %v635 = vpop.permute.xlu0 %634
          %vm637 = vcmask 15360
          %638 = vst.msk [vmem:[#allocation3] sm:$0xff] %vm637, %v635
        $region72: #{tpu_custom_call.1} parent=67 // pred_fallthru
          _
        %v639 = vld [vmem:[%s424] sm:$0xf]
        %v640 = vld [vmem:[%s428] sm:$0xf]
        %v641 = vld [vmem:[#allocation2] sm:$0xff]
        %vm642 = vcmask 130048
        %v644 = vsel %vm642, %v639, 0
        %646 = vmatprep.subr.bf16.mxu0 0
        %647 = vmatpush1.bf16.msra.mxu0 %v641
        %648 = vmatprep.subr.bf16.mxu0 0
        %649 = vmatpush1.bf16.msra.mxu0 0
        %650 = vmatprep.subr.bf16.mxu0 0
        %651 = vmatpush1.bf16.msra.mxu0 0
        %652 = vmatprep.subr.bf16.mxu0 0
        %653 = vmatpush1.bf16.msra.mxu0 0
        %654 = vmatprep.subr.bf16.mxu0 0
        %655 = vmatpush1.bf16.msra.mxu0 0
        %656 = vmatprep.subr.bf16.mxu0 0
        %657 = vmatpush1.bf16.msra.mxu0 0
        %658 = vmatprep.subr.bf16.mxu0 0
        %659 = vmatpush1.bf16.msra.mxu0 0
        %660 = vmatprep.subr.bf16.mxu0 0
        %661 = vmatpush1.bf16.msra.mxu0 0
        %662 = vmatprep.subr.bf16.mxu0 0
        %663 = vmatpush1.bf16.msra.mxu0 0
        %664 = vmatprep.subr.bf16.mxu0 0
        %665 = vmatpush1.bf16.msra.mxu0 0
        %666 = vmatprep.subr.bf16.mxu0 0
        %667 = vmatpush1.bf16.msra.mxu0 0
        %668 = vmatprep.subr.bf16.mxu0 0
        %669 = vmatpush1.bf16.msra.mxu0 0
        %670 = vmatprep.subr.bf16.mxu0 0
        %671 = vmatpush1.bf16.msra.mxu0 0
        %672 = vmatprep.subr.bf16.mxu0 0
        %673 = vmatpush1.bf16.msra.mxu0 0
        %674 = vmatprep.subr.bf16.mxu0 0
        %675 = vmatpush1.bf16.msra.mxu0 0
        %676 = vmatprep.subr.bf16.mxu0 0
        %677 = vmatpush1.bf16.msra.mxu0 0
        %678 = vmatprep.mubr.bf16.mxu0 0
        %679 = vmatmul.mubr.bf16.gmra.mrb[0].mxu0 %v644
        %v680 = vpop.f32.mrb[0].mxu0
        %v681 = vadd.f32 0.0, %v680
        %v682 = vpop.f32.mrb[0].mxu0
        %v683 = vpop.f32.mrb[0].mxu0
        %v684 = vpop.f32.mrb[0].mxu0
        %685 = vdwg.mxu0
        %v686 = vld [vmem:[#allocation3] sm:$0xff]
        %v688 = vsel %vm642, %v640, 0
        %690 = vmatprep.subr.bf16.mxu0 0
        %691 = vmatpush1.bf16.msra.mxu0 %v686
        %692 = vmatprep.subr.bf16.mxu0 0
        %693 = vmatpush1.bf16.msra.mxu0 0
        %694 = vmatprep.subr.bf16.mxu0 0
        %695 = vmatpush1.bf16.msra.mxu0 0
        %696 = vmatprep.subr.bf16.mxu0 0
        %697 = vmatpush1.bf16.msra.mxu0 0
        %698 = vmatprep.subr.bf16.mxu0 0
        %699 = vmatpush1.bf16.msra.mxu0 0
        %700 = vmatprep.subr.bf16.mxu0 0
        %701 = vmatpush1.bf16.msra.mxu0 0
        %702 = vmatprep.subr.bf16.mxu0 0
        %703 = vmatpush1.bf16.msra.mxu0 0
        %704 = vmatprep.subr.bf16.mxu0 0
        %705 = vmatpush1.bf16.msra.mxu0 0
        %706 = vmatprep.subr.bf16.mxu0 0
        %707 = vmatpush1.bf16.msra.mxu0 0
        %708 = vmatprep.subr.bf16.mxu0 0
        %709 = vmatpush1.bf16.msra.mxu0 0
        %710 = vmatprep.subr.bf16.mxu0 0
        %711 = vmatpush1.bf16.msra.mxu0 0
        %712 = vmatprep.subr.bf16.mxu0 0
        %713 = vmatpush1.bf16.msra.mxu0 0
        %714 = vmatprep.subr.bf16.mxu0 0
        %715 = vmatpush1.bf16.msra.mxu0 0
        %716 = vmatprep.subr.bf16.mxu0 0
        %717 = vmatpush1.bf16.msra.mxu0 0
        %718 = vmatprep.subr.bf16.mxu0 0
        %719 = vmatpush1.bf16.msra.mxu0 0
        %720 = vmatprep.subr.bf16.mxu0 0
        %721 = vmatpush1.bf16.msra.mxu0 0
        %722 = vmatprep.mubr.bf16.mxu0 0
        %723 = vmatmul.mubr.bf16.gmra.mrb[0].mxu0 %v688
        %v724 = vpop.f32.mrb[0].mxu0
        %v725 = vadd.f32 0.0, %v724
        %v726 = vpop.f32.mrb[0].mxu0
        %v727 = vpop.f32.mrb[0].mxu0
        %v728 = vpop.f32.mrb[0].mxu0
        %729 = vdwg.mxu0
        %731 = vrot.lane.b32.xlu0 %v725, 64
        %v732 = vpop.permute.xlu0 %731
        %v734 = vadd.f32 %v681, %v732
        %vm735 = vcmp.gt.f32.partialorder %v734, 0.0
        %v736 = vmul.f32 %v734, 0.2
        %v737 = vsel %vm735, %v734, %v736
        %v738 = vmul.f32 %v737, 1.442695
        %v739 = vpow.pop %v738
        %v740 = vld [vmem:[%s432] sm:$0xff]
        %v741 = vld [vmem:[%s6] sm:$0xff]
        %v742 = vld [vmem:[%s7] sm:$0x1]
        %v744 = vlaneseq
        %v745 = vshrl.u32 %v744, 7
        %v746 = vsub.s32 0, %v745
        %v747 = vrot.slane %v742, %v746
        %vm749 = vcmask 64512
        %v751 = vsel %vm749, %v740, 0
        %753 = vmatprep.subr.mxu0 0.0
        %754 = vmatpush1.msra.mxu0 %v741
        %755 = vmatprep.subr.mxu0 0.0
        %756 = vmatpush1.msra.mxu0 0.0
        %757 = vmatprep.subr.mxu0 0.0
        %758 = vmatpush1.msra.mxu0 0.0
        %759 = vmatprep.subr.mxu0 0.0
        %760 = vmatpush1.msra.mxu0 0.0
        %761 = vmatprep.subr.mxu0 0.0
        %762 = vmatpush1.msra.mxu0 0.0
        %763 = vmatprep.subr.mxu0 0.0
        %764 = vmatpush1.msra.mxu0 0.0
        %765 = vmatprep.subr.mxu0 0.0
        %766 = vmatpush1.msra.mxu0 0.0
        %767 = vmatprep.subr.mxu0 0.0
        %768 = vmatpush1.msra.mxu0 0.0
        %769 = vmatprep.subr.mxu0 0.0
        %770 = vmatpush1.msra.mxu0 0.0
        %771 = vmatprep.subr.mxu0 0.0
        %772 = vmatpush1.msra.mxu0 0.0
        %773 = vmatprep.subr.mxu0 0.0
        %774 = vmatpush1.msra.mxu0 0.0
        %775 = vmatprep.subr.mxu0 0.0
        %776 = vmatpush1.msra.mxu0 0.0
        %777 = vmatprep.subr.mxu0 0.0
        %778 = vmatpush1.msra.mxu0 0.0
        %779 = vmatprep.subr.mxu0 0.0
        %780 = vmatpush1.msra.mxu0 0.0
        %781 = vmatprep.subr.mxu0 0.0
        %782 = vmatpush1.msra.mxu0 0.0
        %783 = vmatprep.subr.mxu0 0.0
        %784 = vmatpush1.msra.mxu0 0.0
        %785 = vmatprep.subr.mxu0 0.0
        %786 = vmatpush1.msra.mxu0 0.0
        %787 = vmatprep.subr.mxu0 0.0
        %788 = vmatpush1.msra.mxu0 0.0
        %789 = vmatprep.subr.mxu0 0.0
        %790 = vmatpush1.msra.mxu0 0.0
        %791 = vmatprep.subr.mxu0 0.0
        %792 = vmatpush1.msra.mxu0 0.0
        %793 = vmatprep.subr.mxu0 0.0
        %794 = vmatpush1.msra.mxu0 0.0
        %795 = vmatprep.subr.mxu0 0.0
        %796 = vmatpush1.msra.mxu0 0.0
        %797 = vmatprep.subr.mxu0 0.0
        %798 = vmatpush1.msra.mxu0 0.0
        %799 = vmatprep.subr.mxu0 0.0
        %800 = vmatpush1.msra.mxu0 0.0
        %801 = vmatprep.subr.mxu0 0.0
        %802 = vmatpush1.msra.mxu0 0.0
        %803 = vmatprep.subr.mxu0 0.0
        %804 = vmatpush1.msra.mxu0 0.0
        %805 = vmatprep.subr.mxu0 0.0
        %806 = vmatpush1.msra.mxu0 0.0
        %807 = vmatprep.subr.mxu0 0.0
        %808 = vmatpush1.msra.mxu0 0.0
        %809 = vmatprep.subr.mxu0 0.0
        %810 = vmatpush1.msra.mxu0 0.0
        %811 = vmatprep.subr.mxu0 0.0
        %812 = vmatpush1.msra.mxu0 0.0
        %813 = vmatprep.subr.mxu0 0.0
        %814 = vmatpush1.msra.mxu0 0.0
        %815 = vmatprep.subr.mxu0 0.0
        %816 = vmatpush1.msra.mxu0 0.0
        %817 = vmatprep.mubr.f32.mxu0 0.0
        %818 = vmatmul.mubr.f32.gmra.mrb[0].mxu0 %v751
        %v819 = vpop.f32.mrb[0].mxu0
        %v820 = vadd.f32 %v747, %v819
        %v821 = vpop.f32.mrb[0].mxu0
        %822 = vdwg.mxu0
        %v823 = vmax.f32 %v820, 0.0
        %v824 = vld [vmem:[%s8] sm:$0xff]
        %v825 = vld [vmem:[%s8 + $0x8] sm:$0xff]
        %v826 = vld [vmem:[%s8 + $0x10] sm:$0xff]
        %v827 = vld [vmem:[%s8 + $0x18] sm:$0xff]
        %v828 = vld [vmem:[#allocation6] sm:$0x1]
        %v830 = vlaneseq
        %v831 = vshrl.u32 %v830, 7
        %v832 = vsub.s32 0, %v831
        %v833 = vrot.slane %v828, %v832
        %vm835 = vcmask 261120
        %v837 = vsel %vm835, %v823, 0
        %839 = vmatprep.subr.mxu0 0.0
        %840 = vmatpush1.msra.mxu0 %v824
        %841 = vmatprep.subr.mxu0 0.0
        %842 = vmatpush1.msra.mxu0 %v825
        %843 = vmatprep.subr.mxu0 0.0
        %844 = vmatpush1.msra.mxu0 %v826
        %845 = vmatprep.subr.mxu0 0.0
        %846 = vmatpush1.msra.mxu0 %v827
        %847 = vmatprep.subr.mxu0 0.0
        %848 = vmatpush1.msra.mxu0 0.0
        %849 = vmatprep.subr.mxu0 0.0
        %850 = vmatpush1.msra.mxu0 0.0
        %851 = vmatprep.subr.mxu0 0.0
        %852 = vmatpush1.msra.mxu0 0.0
        %853 = vmatprep.subr.mxu0 0.0
        %854 = vmatpush1.msra.mxu0 0.0
        %855 = vmatprep.subr.mxu0 0.0
        %856 = vmatpush1.msra.mxu0 0.0
        %857 = vmatprep.subr.mxu0 0.0
        %858 = vmatpush1.msra.mxu0 0.0
        %859 = vmatprep.subr.mxu0 0.0
        %860 = vmatpush1.msra.mxu0 0.0
        %861 = vmatprep.subr.mxu0 0.0
        %862 = vmatpush1.msra.mxu0 0.0
        %863 = vmatprep.subr.mxu0 0.0
        %864 = vmatpush1.msra.mxu0 0.0
        %865 = vmatprep.subr.mxu0 0.0
        %866 = vmatpush1.msra.mxu0 0.0
        %867 = vmatprep.subr.mxu0 0.0
        %868 = vmatpush1.msra.mxu0 0.0
        %869 = vmatprep.subr.mxu0 0.0
        %870 = vmatpush1.msra.mxu0 0.0
        %871 = vmatprep.subr.mxu0 0.0
        %872 = vmatpush1.msra.mxu0 0.0
        %873 = vmatprep.subr.mxu0 0.0
        %874 = vmatpush1.msra.mxu0 0.0
        %875 = vmatprep.subr.mxu0 0.0
        %876 = vmatpush1.msra.mxu0 0.0
        %877 = vmatprep.subr.mxu0 0.0
        %878 = vmatpush1.msra.mxu0 0.0
        %879 = vmatprep.subr.mxu0 0.0
        %880 = vmatpush1.msra.mxu0 0.0
        %881 = vmatprep.subr.mxu0 0.0
        %882 = vmatpush1.msra.mxu0 0.0
        %883 = vmatprep.subr.mxu0 0.0
        %884 = vmatpush1.msra.mxu0 0.0
        %885 = vmatprep.subr.mxu0 0.0
        %886 = vmatpush1.msra.mxu0 0.0
        %887 = vmatprep.subr.mxu0 0.0
        %888 = vmatpush1.msra.mxu0 0.0
        %889 = vmatprep.subr.mxu0 0.0
        %890 = vmatpush1.msra.mxu0 0.0
        %891 = vmatprep.subr.mxu0 0.0
        %892 = vmatpush1.msra.mxu0 0.0
        %893 = vmatprep.subr.mxu0 0.0
        %894 = vmatpush1.msra.mxu0 0.0
        %895 = vmatprep.subr.mxu0 0.0
        %896 = vmatpush1.msra.mxu0 0.0
        %897 = vmatprep.subr.mxu0 0.0
        %898 = vmatpush1.msra.mxu0 0.0
        %899 = vmatprep.subr.mxu0 0.0
        %900 = vmatpush1.msra.mxu0 0.0
        %901 = vmatprep.subr.mxu0 0.0
        %902 = vmatpush1.msra.mxu0 0.0
        %903 = vmatprep.mubr.f32.mxu0 0.0
        %904 = vmatmul.mubr.f32.gmra.mrb[0].mxu0 %v837
        %v905 = vpop.f32.mrb[0].mxu0
        %v906 = vadd.f32 %v833, %v905
        %v907 = vpop.f32.mrb[0].mxu0
        %908 = vdwg.mxu0
        %v909 = vmul.f32 %v906, 1.442695
        %v910 = vpow.pop %v909
        %912 = vset.pattern.permute.xlu0 64
        %913 = vperm.xlu0 %912, %v739
        %v914 = vpop.permute.xlu0 %913
        %v916 = vmul.f32 %v681, %v914
        %917 = vset.pattern.permute.xlu0 65
        %918 = vperm.xlu0 %917, %v739
        %v919 = vpop.permute.xlu0 %918
        %v921 = vmul.f32 %v681, %v919
        %923 = vset.pattern.permute.xlu0 0
        %924 = vperm.xlu0 %923, %v910
        %v925 = vpop.permute.xlu0 %924
        %v927 = vmul.f32 %v681, %v925
        %929 = vrot.lane.b32.xlu0 %v927, 64
        %v930 = vpop.permute.xlu0 %929
        %v932 = vsel %vm835, %v916, %v921
        %vm933 = vcmask 523264
        %v934 = vsel %vm933, %v932, %v930
        %vm935 = vcmask 785408
        %v936 = vsel %vm935, %v934, %v930
        %937 = vrot.lane.b32.xlu0 %v739, 64
        %v938 = vpop.permute.xlu0 %937
        %940 = vrot.lane.b32.xlu0 %v910, 2
        %v941 = vpop.permute.xlu0 %940
        %vm943 = vcmask 15360
        %v944 = vsel %vm943, %v938, %v941
        %v945 = vld [vmem:[#allocation4] sm:$0xff]
        %v946 = vld [vmem:[#allocation4 + $0x8] sm:$0xff]
        %v947 = vpack.c.bf16 %v936, %v936
        %948 = vxpose.xlu0.c.b16.start [1/8] %v640, 128
        %949 = vxpose.xlu0.c.b16.cont [2/8] 0, 128
        %950 = vxpose.xlu0.c.b16.cont [3/8] 0, 128
        %951 = vxpose.xlu0.c.b16.cont [4/8] 0, 128
        %952 = vxpose.xlu0.c.b16.cont [5/8] 0, 128
        %953 = vxpose.xlu0.c.b16.cont [6/8] 0, 128
        %954 = vxpose.xlu0.c.b16.cont [7/8] 0, 128
        %955 = vxpose.xlu0.c.b16.end [8/8] 0, 128
        %v956 = vpop.trf.xlu0
        %v957 = vpop.trf.xlu0
        %v958 = vpop.trf.xlu0
        %v959 = vpop.trf.xlu0
        %v960 = vpop.trf.xlu0
        %v961 = vpop.trf.xlu0
        %v962 = vpop.trf.xlu0
        %v963 = vpop.trf.xlu0
        %v965 = vsel %vm749, %v956, 0
        %vm967 = vcmask 1043456
        %v969 = vsel %vm967, %v947, 0
        %971 = vmatprep.subr.bf16.mxu0 0
        %972 = vmatpush1.bf16.msra.mxu0 %v969
        %973 = vmatprep.subr.bf16.mxu0 0
        %974 = vmatpush1.bf16.msra.mxu0 0
        %975 = vmatprep.subr.bf16.mxu0 0
        %976 = vmatpush1.bf16.msra.mxu0 0
        %977 = vmatprep.subr.bf16.mxu0 0
        %978 = vmatpush1.bf16.msra.mxu0 0
        %979 = vmatprep.subr.bf16.mxu0 0
        %980 = vmatpush1.bf16.msra.mxu0 0
        %981 = vmatprep.subr.bf16.mxu0 0
        %982 = vmatpush1.bf16.msra.mxu0 0
        %983 = vmatprep.subr.bf16.mxu0 0
        %984 = vmatpush1.bf16.msra.mxu0 0
        %985 = vmatprep.subr.bf16.mxu0 0
        %986 = vmatpush1.bf16.msra.mxu0 0
        %987 = vmatprep.subr.bf16.mxu0 0
        %988 = vmatpush1.bf16.msra.mxu0 0
        %989 = vmatprep.subr.bf16.mxu0 0
        %990 = vmatpush1.bf16.msra.mxu0 0
        %991 = vmatprep.subr.bf16.mxu0 0
        %992 = vmatpush1.bf16.msra.mxu0 0
        %993 = vmatprep.subr.bf16.mxu0 0
        %994 = vmatpush1.bf16.msra.mxu0 0
        %995 = vmatprep.subr.bf16.mxu0 0
        %996 = vmatpush1.bf16.msra.mxu0 0
        %997 = vmatprep.subr.bf16.mxu0 0
        %998 = vmatpush1.bf16.msra.mxu0 0
        %999 = vmatprep.subr.bf16.mxu0 0
        %1000 = vmatpush1.bf16.msra.mxu0 0
        %1001 = vmatprep.subr.bf16.mxu0 0
        %1002 = vmatpush1.bf16.msra.mxu0 0
        %1003 = vmatprep.mubr.bf16.mxu0 0
        %1004 = vmatmul.mubr.bf16.gmra.mrb[0].mxu0 %v965
        %v1005 = vpop.f32.mrb[0].mxu0
        %v1006 = vadd.f32 0.0, %v1005
        %v1007 = vpop.f32.mrb[0].mxu0
        %v1008 = vpop.f32.mrb[0].mxu0
        %v1009 = vadd.f32 0.0, %v1008
        %v1010 = vpop.f32.mrb[0].mxu0
        %1011 = vdwg.mxu0
        %v1012 = vadd.f32 %v945, %v1006
        %v1013 = vadd.f32 %v946, %v1009
        %1014 = vst [vmem:[#allocation4] sm:$0xff] %v1012
        %1015 = vst [vmem:[#allocation4 + $0x8] sm:$0xff] %v1013
        %v1016 = vld [vmem:[#allocation5] sm:$0xff]
        %v1017 = vld [vmem:[#allocation5 + $0x8] sm:$0xff]
        %v1018 = vpack.c.bf16 %v944, %v944
        %v1020 = vsel %vm967, %v1018, 0
        %1022 = vmatprep.subr.bf16.mxu0 0
        %1023 = vmatpush1.bf16.msra.mxu0 %v1020
        %1024 = vmatprep.subr.bf16.mxu0 0
        %1025 = vmatpush1.bf16.msra.mxu0 0
        %1026 = vmatprep.subr.bf16.mxu0 0
        %1027 = vmatpush1.bf16.msra.mxu0 0
        %1028 = vmatprep.subr.bf16.mxu0 0
        %1029 = vmatpush1.bf16.msra.mxu0 0
        %1030 = vmatprep.subr.bf16.mxu0 0
        %1031 = vmatpush1.bf16.msra.mxu0 0
        %1032 = vmatprep.subr.bf16.mxu0 0
        %1033 = vmatpush1.bf16.msra.mxu0 0
        %1034 = vmatprep.subr.bf16.mxu0 0
        %1035 = vmatpush1.bf16.msra.mxu0 0
        %1036 = vmatprep.subr.bf16.mxu0 0
        %1037 = vmatpush1.bf16.msra.mxu0 0
        %1038 = vmatprep.subr.bf16.mxu0 0
        %1039 = vmatpush1.bf16.msra.mxu0 0
        %1040 = vmatprep.subr.bf16.mxu0 0
        %1041 = vmatpush1.bf16.msra.mxu0 0
        %1042 = vmatprep.subr.bf16.mxu0 0
        %1043 = vmatpush1.bf16.msra.mxu0 0
        %1044 = vmatprep.subr.bf16.mxu0 0
        %1045 = vmatpush1.bf16.msra.mxu0 0
        %1046 = vmatprep.subr.bf16.mxu0 0
        %1047 = vmatpush1.bf16.msra.mxu0 0
        %1048 = vmatprep.subr.bf16.mxu0 0
        %1049 = vmatpush1.bf16.msra.mxu0 0
        %1050 = vmatprep.subr.bf16.mxu0 0
        %1051 = vmatpush1.bf16.msra.mxu0 0
        %1052 = vmatprep.subr.bf16.mxu0 0
        %1053 = vmatpush1.bf16.msra.mxu0 0
        %1054 = vmatprep.mubr.bf16.mxu0 0
        %1055 = vmatmul.mubr.bf16.gmra.mrb[0].mxu0 %v965
        %v1056 = vpop.f32.mrb[0].mxu0
        %v1057 = vadd.f32 0.0, %v1056
        %v1058 = vpop.f32.mrb[0].mxu0
        %v1059 = vpop.f32.mrb[0].mxu0
        %v1060 = vadd.f32 0.0, %v1059
        %v1061 = vpop.f32.mrb[0].mxu0
        %1062 = vdwg.mxu0
        %v1063 = vadd.f32 %v1016, %v1057
        %v1064 = vadd.f32 %v1017, %v1060
        %vm1065 = vcmask 23552
        %1066 = vst.msk [vmem:[#allocation5] sm:$0xff] %vm1065, %v1063
        %1067 = vst.msk [vmem:[#allocation5 + $0x8] sm:$0xff] %vm1065, %v1064
        %p1068 = scmp.eq.s32.totalorder %s26, 2
        // Predicated region
        $region73: #{tpu_custom_call.1} parent=67 // pred_check
          %p1069 = pneg %p1068
        $region74: #{tpu_custom_call.1} parent=67 // pred_check_branch
          %1071 = sbr.rel (%p1069) target = $region76
        $region75: #{tpu_custom_call.1} parent=67 // pred_region
          %v1072 = vld [vmem:[#allocation5] sm:$0xff]
          %v1073 = vld [vmem:[#allocation5 + $0x8] sm:$0xff]
          %v1074 = vadd.f32 %v1072, 1e-09
          %v1075 = vadd.f32 %v1073, 1e-09
          %v1076 = vrcp.pop %v1074
          %v1077 = vrcp.pop %v1075
          %v1078 = vld [vmem:[#allocation4] sm:$0xff]
          %v1079 = vld [vmem:[#allocation4 + $0x8] sm:$0xff]
          %1081 = vset.pattern.permute.xlu0 0
          %1082 = vperm.xlu0 %1081, %v1076
          %v1083 = vpop.permute.xlu0 %1082
          %1086 = vset.pattern.permute.xlu0 0
          %1087 = vperm.xlu0 %1086, %v1077
          %v1088 = vpop.permute.xlu0 %1087
          %v1090 = vmul.f32 %v1078, %v1083
          %v1091 = vmul.f32 %v1079, %v1088
          %1092 = vset.pattern.permute.xlu0 1
          %1093 = vperm.xlu0 %1092, %v1076
          %v1094 = vpop.permute.xlu0 %1093
          %1096 = vset.pattern.permute.xlu0 1
          %1097 = vperm.xlu0 %1096, %v1077
          %v1098 = vpop.permute.xlu0 %1097
          %v1100 = vmul.f32 %v1078, %v1094
          %v1101 = vmul.f32 %v1079, %v1098
          %1102 = vset.pattern.permute.xlu0 2
          %1103 = vperm.xlu0 %1102, %v1076
          %v1104 = vpop.permute.xlu0 %1103
          %1106 = vset.pattern.permute.xlu0 2
          %1107 = vperm.xlu0 %1106, %v1077
          %v1108 = vpop.permute.xlu0 %1107
          %v1110 = vmul.f32 %v1078, %v1104
          %v1111 = vmul.f32 %v1079, %v1108
          %v1112 = vsel %vm835, %v1090, %v1100
          %v1113 = vsel %vm835, %v1091, %v1101
          %v1114 = vsel %vm933, %v1112, %v1110
          %v1115 = vsel %vm933, %v1113, %v1111
          %v1116 = vsel %vm935, %v1114, %v1110
          %v1117 = vsel %vm935, %v1115, %v1111
          %v1118 = vld [vmem:[%s10] sm:$0xff]
          %v1119 = vld [vmem:[%s10 + $0x8] sm:$0xff]
          %v1120 = vld [vmem:[%s10 + $0x10] sm:$0xff]
          %v1121 = vld [vmem:[%s10 + $0x18] sm:$0xff]
          %v1122 = vld [vmem:[%s10 + $0x20] sm:$0xff]
          %v1123 = vld [vmem:[%s10 + $0x28] sm:$0xff]
          %v1124 = vld [vmem:[%s10 + $0x30] sm:$0xff]
          %v1125 = vld [vmem:[%s10 + $0x38] sm:$0xff]
          %v1126 = vld [vmem:[%s10 + $0x40] sm:$0xff]
          %v1127 = vld [vmem:[%s10 + $0x48] sm:$0xff]
          %v1128 = vld [vmem:[%s10 + $0x50] sm:$0xff]
          %v1129 = vld [vmem:[%s10 + $0x58] sm:$0xff]
          %v1130 = vld [vmem:[%s10 + $0x60] sm:$0xff]
          %v1131 = vld [vmem:[%s10 + $0x68] sm:$0xff]
          %v1132 = vld [vmem:[%s10 + $0x70] sm:$0xff]
          %v1133 = vld [vmem:[%s10 + $0x78] sm:$0xff]
          %v1134 = vld [vmem:[%s11] sm:$0x1]
          %v1136 = vlaneseq
          %v1137 = vshrl.u32 %v1136, 7
          %v1138 = vsub.s32 0, %v1137
          %v1139 = vrot.slane %v1134, %v1138
          %1141 = vmatprep.subr.mxu0 0.0
          %1142 = vmatpush1.msra.mxu0 %v1118
          %1143 = vmatprep.subr.mxu0 0.0
          %1144 = vmatpush1.msra.mxu0 %v1119
          %1145 = vmatprep.subr.mxu0 0.0
          %1146 = vmatpush1.msra.mxu0 %v1120
          %1147 = vmatprep.subr.mxu0 0.0
          %1148 = vmatpush1.msra.mxu0 %v1121
          %1149 = vmatprep.subr.mxu0 0.0
          %1150 = vmatpush1.msra.mxu0 %v1122
          %1151 = vmatprep.subr.mxu0 0.0
          %1152 = vmatpush1.msra.mxu0 %v1123
          %1153 = vmatprep.subr.mxu0 0.0
          %1154 = vmatpush1.msra.mxu0 %v1124
          %1155 = vmatprep.subr.mxu0 0.0
          %1156 = vmatpush1.msra.mxu0 %v1125
          %1157 = vmatprep.subr.mxu0 0.0
          %1158 = vmatpush1.msra.mxu0 %v1126
          %1159 = vmatprep.subr.mxu0 0.0
          %1160 = vmatpush1.msra.mxu0 %v1127
          %1161 = vmatprep.subr.mxu0 0.0
          %1162 = vmatpush1.msra.mxu0 %v1128
          %1163 = vmatprep.subr.mxu0 0.0
          %1164 = vmatpush1.msra.mxu0 %v1129
          %1165 = vmatprep.subr.mxu0 0.0
          %1166 = vmatpush1.msra.mxu0 %v1130
          %1167 = vmatprep.subr.mxu0 0.0
          %1168 = vmatpush1.msra.mxu0 %v1131
          %1169 = vmatprep.subr.mxu0 0.0
          %1170 = vmatpush1.msra.mxu0 %v1132
          %1171 = vmatprep.subr.mxu0 0.0
          %1172 = vmatpush1.msra.mxu0 %v1133
          %1173 = vmatprep.subr.mxu0 0.0
          %1174 = vmatpush1.msra.mxu0 0.0
          %1175 = vmatprep.subr.mxu0 0.0
          %1176 = vmatpush1.msra.mxu0 0.0
          %1177 = vmatprep.subr.mxu0 0.0
          %1178 = vmatpush1.msra.mxu0 0.0
          %1179 = vmatprep.subr.mxu0 0.0
          %1180 = vmatpush1.msra.mxu0 0.0
          %1181 = vmatprep.subr.mxu0 0.0
          %1182 = vmatpush1.msra.mxu0 0.0
          %1183 = vmatprep.subr.mxu0 0.0
          %1184 = vmatpush1.msra.mxu0 0.0
          %1185 = vmatprep.subr.mxu0 0.0
          %1186 = vmatpush1.msra.mxu0 0.0
          %1187 = vmatprep.subr.mxu0 0.0
          %1188 = vmatpush1.msra.mxu0 0.0
          %1189 = vmatprep.subr.mxu0 0.0
          %1190 = vmatpush1.msra.mxu0 0.0
          %1191 = vmatprep.subr.mxu0 0.0
          %1192 = vmatpush1.msra.mxu0 0.0
          %1193 = vmatprep.subr.mxu0 0.0
          %1194 = vmatpush1.msra.mxu0 0.0
          %1195 = vmatprep.subr.mxu0 0.0
          %1196 = vmatpush1.msra.mxu0 0.0
          %1197 = vmatprep.subr.mxu0 0.0
          %1198 = vmatpush1.msra.mxu0 0.0
          %1199 = vmatprep.subr.mxu0 0.0
          %1200 = vmatpush1.msra.mxu0 0.0
          %1201 = vmatprep.subr.mxu0 0.0
          %1202 = vmatpush1.msra.mxu0 0.0
          %1203 = vmatprep.subr.mxu0 0.0
          %1204 = vmatpush1.msra.mxu0 0.0
          %1205 = vmatprep.mubr.f32.mxu0 0.0
          %1206 = vmatmul.mubr.f32.gmra.mrb[0].mxu0 %v1116
          %v1207 = vpop.f32.mrb[0].mxu0
          %v1208 = vadd.f32 %v1139, %v1207
          %v1209 = vpop.f32.mrb[0].mxu0
          %1210 = vmatprep.mubr.f32.mxu0 0.0
          %1211 = vmatmul.mubr.f32.gmra.mrb[0].mxu0 %v1117
          %v1212 = vpop.f32.mrb[0].mxu0
          %v1213 = vadd.f32 %v1139, %v1212
          %v1214 = vpop.f32.mrb[0].mxu0
          %1215 = vdwg.mxu0
          %v1216 = vmax.f32 %v1208, 0.0
          %v1217 = vmax.f32 %v1213, 0.0
          %1218 = vst.msk [vmem:[#allocation7] sm:$0xff] %vm835, %v1216
          %1219 = vst.msk [vmem:[#allocation7 + $0x8] sm:$0xff] %vm835, %v1217
        $region76: #{tpu_custom_call.1} parent=67 // pred_fallthru
          _
        // Predicated region
        $region77: #{tpu_custom_call.1} parent=67 // pred_check
          %p1220 = pneg %p306
        $region78: #{tpu_custom_call.1} parent=67 // pred_check_branch
          %1222 = sbr.rel (%p1220) target = $region80
        $region79: #{tpu_custom_call.1} parent=67 // pred_region
          %s1224 = ssub.s32 256, 256
          %1225 = vsyncadd [#allocation8], %s1224
          %s1226 = sshll.u32 [#allocation7], 4
          %s1227 = int_to_ptr.vmem [resolvable:$true] %s1226
          %1232 = dma.vmem_to_hbm [thread:$0]  %s1227, 256, %s12, [#allocation8], 128, 128, 8
        $region80: #{tpu_custom_call.1} parent=67 // pred_fallthru
          _
        // Predicated region
        $region81: #{tpu_custom_call.1} parent=67 // pred_check
          %p1233 = pneg %p306
        $region82: #{tpu_custom_call.1} parent=67 // pred_check_branch
          %1235 = sbr.rel (%p1233) target = $region84
        $region83: #{tpu_custom_call.1} parent=67 // pred_region
          %1236 = dma.done [#allocation8], 256
        $region84: #{tpu_custom_call.1} parent=67 // pred_fallthru
          _
      $region68: #{tpu_custom_call.1} parent=5 // pred_fallthru
        _
      %p1237 = scmp.le.s32.totalorder 2, %s21
      // Predicated region
      $region85: #{tpu_custom_call.1} parent=5 // pred_check
        %p1238 = pneg %p1237
      $region86: #{tpu_custom_call.1} parent=5 // pred_check_branch
        %1240 = sbr.rel (%p1238) target = $region88
      $region87: #{tpu_custom_call.1} parent=5 // pred_region
        %s1241 = ssub.s32 %s21, 2
      $region88: #{tpu_custom_call.1} parent=5 // pred_fallthru
        _
    $region6: #{tpu_custom_call.1} parent=1 // loop_footer
      %s25 = sadd.s32 1, %s21
    $region7: #{tpu_custom_call.1} parent=1 // loop_footer_branch
      %20 = sbr.rel target = $region3
    $region8: #{tpu_custom_call.1} parent=1 // loop_exit
      _
    %1242 = vsyncpa [#allocation8], 1
    %s1243 = scalar_lea.sflag [#allocation8], 1
    %1244 = vsyncpa %s1243, 1

</llo_original>
